<compile_context>
chip_gen: v6e
topology: v6e:2x2x1
jax: 0.10.0
libtpu: 0.0.40
codegen_flags: <defaults>
</compile_context>

<pallas_src>
import functools

import jax
import jax.numpy as jnp
from jax.experimental import pallas as pl
from jax.experimental.pallas import tpu as pltpu


# ----------------------------------------------------------------------------
# Fused SPPF kernel.  One grid step == one batch element.
#   x_ref  : (C1, HW)        activations, NCHW flattened (compute dtype)
#   w1_ref : (c_, C1)        cv1 weight (BN folded), left-multiply form
#   b1_ref : (c_, 1)         cv1 bias (BN folded), f32
#   w2_ref : (4, c2, c_)     cv2 weight split into the 4 concat groups
#   b2_ref : (c2, 1)         cv2 bias, f32
#   col_ref: (1, HW) int32   column index (p % W), precomputed in the wrapper
#   o_ref  : (c2, HW)        output (compute dtype), lane-dense last dim
#   pad_ref: (c_, LP+HW+2W)  pool-dtype VMEM scratch (H-pass shift windows)
# ----------------------------------------------------------------------------
def _sppf_fused_kernel(x_ref, w1_ref, b1_ref, w2_ref, b2_ref, col_ref,
                       o_ref, pad_ref, *, width, lp):
    W = width
    LP = lp
    HW = x_ref.shape[-1]
    cdt = x_ref.dtype                      # matmul/storage dtype (f32 or bf16)
    pdt = pad_ref.dtype                    # pool dtype (f32 default)
    NEG = float("-inf")

    # Fill only the pad columns (interior is fully overwritten every pass).
    # Done per grid step (cheap: ~(c_, LP+2W)) so megacore grid sharding can
    # never observe an uninitialized scratch.
    pad_ref[:, :LP] = jnp.full((pad_ref.shape[0], LP), NEG, dtype=pdt)
    pad_ref[:, LP + HW:] = jnp.full((pad_ref.shape[0], 2 * W), NEG, dtype=pdt)

    # Column-validity masks for the W-pass, hoisted out of the pool calls.
    col = col_ref[...]                                          # (1, HW) i32
    shifts = (-2, -1, 1, 2)
    masks = {dc: (col >= -dc) if dc < 0 else (col < W - dc) for dc in shifts}

    def maxpool5(a):
        """5x5, stride 1, pad 2 (-inf) max-pool on (c_, H*W), separable."""
        # Pass 1 (along H): row shifts are exact multiples of W on the
        # flattened axis -> the -inf pad columns alone handle boundaries.
        # Store only the interior; read shifted windows straight from the ref.
        pad_ref[:, LP:LP + HW] = a
        t = a
        for dh in shifts:
            off = LP + dh * W
            t = jnp.maximum(t, pad_ref[:, off:off + HW])
        # Pass 2 (along W): XLU lane rolls + precomputed column masks; the
        # masks also kill the flattened-axis wraparound of the rotation.
        y = t
        for dc in shifts:
            s = pltpu.roll(t, shift=(-dc) % HW, axis=1)
            y = jnp.maximum(y, jnp.where(masks[dc], s, NEG))
        return y

    # ---- cv1: 1x1 conv + folded BN + SiLU (MXU, f32 accumulation) ----------
    acc1 = jnp.dot(w1_ref[...], x_ref[...],
                   preferred_element_type=jnp.float32)          # (c_, HW)
    acc1 = acc1 + b1_ref[...]
    x1 = (acc1 * jax.nn.sigmoid(acc1)).astype(pdt)              # SiLU

    # ---- cv2 partial matmuls interleaved with the pool chain ---------------
    # (the concat is never materialized; MXU work hides under the pool VPU
    #  work; only one y_i is live at a time)
    acc2 = jnp.dot(w2_ref[0], x1.astype(cdt),
                   preferred_element_type=jnp.float32)
    y1 = maxpool5(x1)
    acc2 = acc2 + jnp.dot(w2_ref[1], y1.astype(cdt),
                          preferred_element_type=jnp.float32)
    y2 = maxpool5(y1)
    acc2 = acc2 + jnp.dot(w2_ref[2], y2.astype(cdt),
                          preferred_element_type=jnp.float32)
    y3 = maxpool5(y2)
    acc2 = acc2 + jnp.dot(w2_ref[3], y3.astype(cdt),
                          preferred_element_type=jnp.float32)

    acc2 = acc2 + b2_ref[...]
    o_ref[...] = (acc2 * jax.nn.sigmoid(acc2)).astype(o_ref.dtype)


# ----------------------------------------------------------------------------
# Wrapper: NCHW in / NCHW out (only free row-major reshapes on activations).
#   compute_dtype=None -> use x.dtype (pass bf16 inputs directly, no cast op).
#   pool_dtype         -> f32 (exact; required on v5e).  bf16 OK on v6e/v7x.
# ----------------------------------------------------------------------------
def sppf_forward(x_nchw, params, *, compute_dtype=None, pool_dtype=jnp.float32):
    (w1, b1), (w2, b2) = params
    N, C1, H, W = x_nchw.shape
    HW = H * W
    c_ = w1.shape[0]
    C2 = w2.shape[0]
    assert w1.shape == (c_, C1) and w2.shape == (C2, 4 * c_)

    cdt = jnp.dtype(compute_dtype) if compute_dtype is not None else x_nchw.dtype
    pdt = jnp.dtype(pool_dtype)
    LP = ((2 * W + 127) // 128) * 128        # 128-aligned left pad (>= 2*W)
    pad_elems = LP + HW + 2 * W

    x2 = x_nchw.reshape(N, C1, HW)                               # free reshape
    if x2.dtype != cdt:
        x2 = x2.astype(cdt)
    w1c = w1.astype(cdt)                                         # (c_, C1)
    w2s = (w2.reshape(C2, 4, c_).transpose(1, 0, 2)              # (4, C2, c_)
           .astype(cdt))
    b1c = b1.reshape(c_, 1).astype(jnp.float32)
    b2c = b2.reshape(C2, 1).astype(jnp.float32)
    col = (jnp.arange(HW, dtype=jnp.int32) % W).reshape(1, HW)

    # Explicit per-step VMEM budget: double-buffered x/out blocks, (double-
    # buffered) weights, pad scratch, and headroom for the live f32
    # intermediates / spills.  Constant-index weight blocks would ideally be
    # single-buffered (pl.Buffered(1)); left default for portability.
    isz = jnp.dtype(cdt).itemsize
    est = (2 * C1 * HW * isz + 2 * C2 * HW * isz
           + 2 * (c_ * C1 + 4 * C2 * c_) * isz
           + c_ * pad_elems * jnp.dtype(pdt).itemsize
           + 6 * c_ * HW * 4
           + (1 << 20))
    vmem_limit = int(min(64 * 2 ** 20, max(32 * 2 ** 20, 2 * est)))

    kern = functools.partial(_sppf_fused_kernel, width=W, lp=LP)
    out = pl.pallas_call(
        kern,
        out_shape=jax.ShapeDtypeStruct((N, C2, HW), cdt),
        grid_spec=pltpu.PrefetchScalarGridSpec(
            num_scalar_prefetch=0,
            grid=(N,),
            in_specs=[
                pl.BlockSpec((None, C1, HW), lambda n: (n, 0, 0)),   # x
                pl.BlockSpec((c_, C1), lambda n: (0, 0)),            # w1
                pl.BlockSpec((c_, 1), lambda n: (0, 0)),             # b1
                pl.BlockSpec((4, C2, c_), lambda n: (0, 0, 0)),      # w2 split
                pl.BlockSpec((C2, 1), lambda n: (0, 0)),             # b2
                pl.BlockSpec((1, HW), lambda n: (0, 0)),             # col idx
            ],
            out_specs=pl.BlockSpec((None, C2, HW), lambda n: (n, 0, 0)),
            scratch_shapes=[pltpu.VMEM((c_, pad_elems), pdt)],
        ),
        compiler_params=pltpu.CompilerParams(
            dimension_semantics=("parallel",),      # megacore / 2 TCs on v7x
            vmem_limit_bytes=vmem_limit,
        ),
    )(x2, w1c, b1c, w2s, b2c, col)
    return out.reshape(N, C2, H, W)


# ----------------------------------------------------------------------------
# Parameter construction (deterministic, synthetic) + BN folding.
# Conv weight follows PyTorch: (cout, cin, 1, 1), no bias; BN eps = 1e-3.
# Folded: w' = w * scale[out]   b' = beta - mean * scale   (left-multiply form)
# ----------------------------------------------------------------------------
def make_conv_bn_params(key, cin, cout, eps=1e-3):
    k0, k1, k2, k3, k4 = jax.random.split(key, 5)
    w = jax.random.normal(k0, (cout, cin, 1, 1), jnp.float32) * 0.1
    gamma = jax.random.uniform(k1, (cout,), jnp.float32, 0.5, 1.5)
    beta = jax.random.normal(k2, (cout,), jnp.float32) * 0.1
    mean = jax.random.normal(k3, (cout,), jnp.float32) * 0.1
    var = jax.random.uniform(k4, (cout,), jnp.float32, 0.5, 1.5)
    scale = gamma / jnp.sqrt(var + eps)
    w_mat = w[:, :, 0, 0] * scale[:, None]      # (cout, cin)
    b_vec = beta - mean * scale                 # (cout,)
    return w_mat, b_vec


# ----------------------------------------------------------------------------
# Pure-JAX reference (NCHW) for verification.
# ----------------------------------------------------------------------------
def sppf_reference(x_nchw, params, *, k=5):
    (w1, b1), (w2, b2) = params

    def conv_bn_silu(x, w, b):                   # x: (N, Cin, H, W)
        y = jnp.einsum("oc,nchw->nohw", w, x) + b[None, :, None, None]
        return y * jax.nn.sigmoid(y)

    def mp(x):                                   # 5x5 / s1 / p2 max-pool
        p = k // 2
        xp = jnp.pad(x, ((0, 0), (0, 0), (p, p), (p, p)),
                     constant_values=-jnp.inf)
        H, W = x.shape[2], x.shape[3]
        m = xp[:, :, 0:H, 0:W]
        for dy in range(k):
            for dx in range(k):
                m = jnp.maximum(m, xp[:, :, dy:dy + H, dx:dx + W])
        return m

    x1 = conv_bn_silu(x_nchw, w1, b1)
    y1 = mp(x1)
    y2 = mp(y1)
    y3 = mp(y2)
    return conv_bn_silu(jnp.concatenate([x1, y1, y2, y3], axis=1), w2, b2)


if __name__ == "__main__":
    key = jax.random.PRNGKey(0)
    k_x, k_p1, k_p2 = jax.random.split(key, 3)

    N, C1, H, W = 2, 4, 16, 16
    C2 = 8
    C_ = C1 // 2

    x = jax.random.normal(k_x, (N, C1, H, W), jnp.float32)
    params = (
        make_conv_bn_params(k_p1, C1, C_),        # cv1
        make_conv_bn_params(k_p2, 4 * C_, C2),    # cv2
    )

    ref = jax.block_until_ready(sppf_reference(x, params))

    # f32 path (exact check)
    out_f32 = jax.block_until_ready(sppf_forward(x, params))
    assert out_f32.shape == (N, C2, H, W), out_f32.shape
    assert jnp.allclose(out_f32, ref, rtol=1e-3, atol=1e-3), \
        float(jnp.max(jnp.abs(out_f32 - ref)))

    # bf16 storage / MXU path: cast once outside the wrapper (accepted
    # directly, no wrapper-side astype HBM op); f32 accumulation inside.
    x_bf16 = x.astype(jnp.bfloat16)
    out_bf16 = jax.block_until_ready(sppf_forward(x_bf16, params))
    diff = jnp.abs(out_bf16.astype(jnp.float32) - ref)
    assert jnp.allclose(out_bf16.astype(jnp.float32), ref,
                        rtol=5e-2, atol=5e-2), float(jnp.max(diff))

    print("KERNEL_OK")
</pallas_src>

<mosaic_0001>
module attributes {stable_mosaic.version = 11 : i64} {
  func.func @_sppf_fused_kernel(%arg0: i32, %arg1: memref<1x4x256xf32, #tpu.memory_space<vmem>>, %arg2: memref<2x4xf32, #tpu.memory_space<vmem>>, %arg3: memref<2x1xf32, #tpu.memory_space<vmem>>, %arg4: memref<4x8x2xf32, #tpu.memory_space<vmem>>, %arg5: memref<8x1xf32, #tpu.memory_space<vmem>>, %arg6: memref<1x256xi32, #tpu.memory_space<vmem>>, %arg7: memref<1x8x256xf32, #tpu.memory_space<vmem>>, %arg8: memref<2x416xf32, #tpu.memory_space<vmem>>) attributes {dimension_semantics = [#tpu.dimension_semantics<parallel>], iteration_bounds = array<i64: 2>, scalar_prefetch = 0 : i64, scratch_operands = 1 : i64, tpu.core_type = #tpu.core_type<tc>, window_params = [{transform_indices = @transform_0, window_bounds = array<i64: 1, 4, 256>}, {pipeline_mode = #tpu.pipeline_mode<synchronous>, transform_indices = @transform_1, window_bounds = array<i64: 2, 4>}, {pipeline_mode = #tpu.pipeline_mode<synchronous>, transform_indices = @transform_2, window_bounds = array<i64: 2, 1>}, {pipeline_mode = #tpu.pipeline_mode<synchronous>, transform_indices = @transform_3, window_bounds = array<i64: 4, 8, 2>}, {pipeline_mode = #tpu.pipeline_mode<synchronous>, transform_indices = @transform_4, window_bounds = array<i64: 8, 1>}, {pipeline_mode = #tpu.pipeline_mode<synchronous>, transform_indices = @transform_5, window_bounds = array<i64: 1, 256>}, {transform_indices = @transform_6, window_bounds = array<i64: 1, 8, 256>}]} {
    %cst = arith.constant 0xFF800000 : f32
    %0 = vector.broadcast %cst : f32 to vector<2x128xf32>
    %c0 = arith.constant 0 : index
    %c0_0 = arith.constant 0 : index
    %1 = vector.load %arg8[%c0, %c0_0] : memref<2x416xf32, #tpu.memory_space<vmem>>, vector<2x128xf32>
    tpu.vector_store %arg8[%c0, %c0_0], %0 {strides = array<i32>} : memref<2x416xf32, #tpu.memory_space<vmem>>, vector<2x128xf32>,
    %cst_1 = arith.constant 0xFF800000 : f32
    %2 = vector.broadcast %cst_1 : f32 to vector<2x32xf32>
    %c0_2 = arith.constant 0 : index
    %c384 = arith.constant 384 : index
    %3 = vector.load %arg8[%c0_2, %c384] : memref<2x416xf32, #tpu.memory_space<vmem>>, vector<2x32xf32>
    tpu.vector_store %arg8[%c0_2, %c384], %2 {strides = array<i32>} : memref<2x416xf32, #tpu.memory_space<vmem>>, vector<2x32xf32>,
    %c0_3 = arith.constant 0 : index
    %c0_4 = arith.constant 0 : index
    %4 = vector.load %arg6[%c0_3, %c0_4] : memref<1x256xi32, #tpu.memory_space<vmem>>, vector<1x256xi32>
    %c2_i32 = arith.constant 2 : i32
    %5 = vector.broadcast %c2_i32 : i32 to vector<1x256xi32>
    %6 = arith.cmpi sge, %4, %5 : vector<1x256xi32>
    %c1_i32 = arith.constant 1 : i32
    %7 = vector.broadcast %c1_i32 : i32 to vector<1x256xi32>
    %8 = arith.cmpi sge, %4, %7 : vector<1x256xi32>
    %c15_i32 = arith.constant 15 : i32
    %9 = vector.broadcast %c15_i32 : i32 to vector<1x256xi32>
    %10 = arith.cmpi slt, %4, %9 : vector<1x256xi32>
    %c14_i32 = arith.constant 14 : i32
    %11 = vector.broadcast %c14_i32 : i32 to vector<1x256xi32>
    %12 = arith.cmpi slt, %4, %11 : vector<1x256xi32>
    %c0_5 = arith.constant 0 : index
    %c0_6 = arith.constant 0 : index
    %13 = vector.load %arg2[%c0_5, %c0_6] : memref<2x4xf32, #tpu.memory_space<vmem>>, vector<2x4xf32>
    %c0_7 = arith.constant 0 : index
    %c0_8 = arith.constant 0 : index
    %c0_9 = arith.constant 0 : index
    %14 = vector.load %arg1[%c0_7, %c0_8, %c0_9] : memref<1x4x256xf32, #tpu.memory_space<vmem>>, vector<1x4x256xf32>
    %15 = vector.shape_cast %14 : vector<1x4x256xf32> to vector<4x256xf32>
    %cst_10 = arith.constant dense<0.000000e+00> : vector<2x256xf32>
    %16 = tpu.matmul %13, %15, %cst_10 {dimension_numbers = #tpu.dot_dimension_numbers<[1], [0], [0], [1], [0, 0, 1, 1], [], []>} : vector<2x4xf32>, vector<4x256xf32>, vector<2x256xf32> -> vector<2x256xf32>
    %c0_11 = arith.constant 0 : index
    %c0_12 = arith.constant 0 : index
    %17 = vector.load %arg3[%c0_11, %c0_12] : memref<2x1xf32, #tpu.memory_space<vmem>>, vector<2x1xf32>
    %18 = vector.broadcast %17 : vector<2x1xf32> to vector<2x256xf32>
    %19 = arith.addf %16, %18 : vector<2x256xf32>
    %20 = arith.negf %19 : vector<2x256xf32>
    %21 = math.exp %20 : vector<2x256xf32>
    %cst_13 = arith.constant 1.000000e+00 : f32
    %22 = vector.broadcast %cst_13 : f32 to vector<2x256xf32>
    %23 = arith.addf %22, %21 : vector<2x256xf32>
    %24 = arith.divf %22, %23 : vector<2x256xf32>
    %25 = arith.mulf %19, %24 : vector<2x256xf32>
    %c0_14 = arith.constant 0 : index
    %c0_15 = arith.constant 0 : index
    %c0_16 = arith.constant 0 : index
    %26 = vector.load %arg4[%c0_14, %c0_15, %c0_16] : memref<4x8x2xf32, #tpu.memory_space<vmem>>, vector<1x8x2xf32>
    %27 = vector.shape_cast %26 : vector<1x8x2xf32> to vector<8x2xf32>
    %cst_17 = arith.constant dense<0.000000e+00> : vector<8x256xf32>
    %28 = tpu.matmul %27, %25, %cst_17 {dimension_numbers = #tpu.dot_dimension_numbers<[1], [0], [0], [1], [0, 0, 1, 1], [], []>} : vector<8x2xf32>, vector<2x256xf32>, vector<8x256xf32> -> vector<8x256xf32>
    %c0_18 = arith.constant 0 : index
    %c128 = arith.constant 128 : index
    %29 = vector.load %arg8[%c0_18, %c128] : memref<2x416xf32, #tpu.memory_space<vmem>>, vector<2x256xf32>
    tpu.vector_store %arg8[%c0_18, %c128], %25 {strides = array<i32>} : memref<2x416xf32, #tpu.memory_space<vmem>>, vector<2x256xf32>,
    %c0_19 = arith.constant 0 : index
    %c96 = arith.constant 96 : index
    %30 = vector.load %arg8[%c0_19, %c96] : memref<2x416xf32, #tpu.memory_space<vmem>>, vector<2x256xf32>
    %31 = arith.maximumf %25, %30 : vector<2x256xf32>
    %c0_20 = arith.constant 0 : index
    %c112 = arith.constant 112 : index
    %32 = vector.load %arg8[%c0_20, %c112] : memref<2x416xf32, #tpu.memory_space<vmem>>, vector<2x256xf32>
    %33 = arith.maximumf %31, %32 : vector<2x256xf32>
    %c0_21 = arith.constant 0 : index
    %c144 = arith.constant 144 : index
    %34 = vector.load %arg8[%c0_21, %c144] : memref<2x416xf32, #tpu.memory_space<vmem>>, vector<2x256xf32>
    %35 = arith.maximumf %33, %34 : vector<2x256xf32>
    %c0_22 = arith.constant 0 : index
    %c160 = arith.constant 160 : index
    %36 = vector.load %arg8[%c0_22, %c160] : memref<2x416xf32, #tpu.memory_space<vmem>>, vector<2x256xf32>
    %37 = arith.maximumf %35, %36 : vector<2x256xf32>
    %c2_i32_23 = arith.constant 2 : i32
    %38 = tpu.dynamic_rotate %37 by %c2_i32_23 dim 1 : vector<2x256xf32>, i32 -> vector<2x256xf32>
    %cst_24 = arith.constant 0xFF800000 : f32
    %39 = vector.shape_cast %6 : vector<1x256xi1> to vector<1x256xi1>
    %40 = vector.broadcast %39 : vector<1x256xi1> to vector<2x256xi1>
    %41 = vector.broadcast %cst_24 : f32 to vector<2x256xf32>
    %42 = arith.select %40, %38, %41 : vector<2x256xi1>, vector<2x256xf32>
    %43 = arith.maximumf %37, %42 : vector<2x256xf32>
    %c1_i32_25 = arith.constant 1 : i32
    %44 = tpu.dynamic_rotate %37 by %c1_i32_25 dim 1 : vector<2x256xf32>, i32 -> vector<2x256xf32>
    %cst_26 = arith.constant 0xFF800000 : f32
    %45 = vector.shape_cast %8 : vector<1x256xi1> to vector<1x256xi1>
    %46 = vector.broadcast %45 : vector<1x256xi1> to vector<2x256xi1>
    %47 = vector.broadcast %cst_26 : f32 to vector<2x256xf32>
    %48 = arith.select %46, %44, %47 : vector<2x256xi1>, vector<2x256xf32>
    %49 = arith.maximumf %43, %48 : vector<2x256xf32>
    %c255_i32 = arith.constant 255 : i32
    %50 = tpu.dynamic_rotate %37 by %c255_i32 dim 1 : vector<2x256xf32>, i32 -> vector<2x256xf32>
    %cst_27 = arith.constant 0xFF800000 : f32
    %51 = vector.shape_cast %10 : vector<1x256xi1> to vector<1x256xi1>
    %52 = vector.broadcast %51 : vector<1x256xi1> to vector<2x256xi1>
    %53 = vector.broadcast %cst_27 : f32 to vector<2x256xf32>
    %54 = arith.select %52, %50, %53 : vector<2x256xi1>, vector<2x256xf32>
    %55 = arith.maximumf %49, %54 : vector<2x256xf32>
    %c254_i32 = arith.constant 254 : i32
    %56 = tpu.dynamic_rotate %37 by %c254_i32 dim 1 : vector<2x256xf32>, i32 -> vector<2x256xf32>
    %cst_28 = arith.constant 0xFF800000 : f32
    %57 = vector.shape_cast %12 : vector<1x256xi1> to vector<1x256xi1>
    %58 = vector.broadcast %57 : vector<1x256xi1> to vector<2x256xi1>
    %59 = vector.broadcast %cst_28 : f32 to vector<2x256xf32>
    %60 = arith.select %58, %56, %59 : vector<2x256xi1>, vector<2x256xf32>
    %61 = arith.maximumf %55, %60 : vector<2x256xf32>
    %c1 = arith.constant 1 : index
    %c0_29 = arith.constant 0 : index
    %c0_30 = arith.constant 0 : index
    %62 = vector.load %arg4[%c1, %c0_29, %c0_30] : memref<4x8x2xf32, #tpu.memory_space<vmem>>, vector<1x8x2xf32>
    %63 = vector.shape_cast %62 : vector<1x8x2xf32> to vector<8x2xf32>
    %cst_31 = arith.constant dense<0.000000e+00> : vector<8x256xf32>
    %64 = tpu.matmul %63, %61, %cst_31 {dimension_numbers = #tpu.dot_dimension_numbers<[1], [0], [0], [1], [0, 0, 1, 1], [], []>} : vector<8x2xf32>, vector<2x256xf32>, vector<8x256xf32> -> vector<8x256xf32>
    %65 = arith.addf %28, %64 : vector<8x256xf32>
    %c0_32 = arith.constant 0 : index
    %c128_33 = arith.constant 128 : index
    %66 = vector.load %arg8[%c0_32, %c128_33] : memref<2x416xf32, #tpu.memory_space<vmem>>, vector<2x256xf32>
    tpu.vector_store %arg8[%c0_32, %c128_33], %61 {strides = array<i32>} : memref<2x416xf32, #tpu.memory_space<vmem>>, vector<2x256xf32>,
    %c0_34 = arith.constant 0 : index
    %c96_35 = arith.constant 96 : index
    %67 = vector.load %arg8[%c0_34, %c96_35] : memref<2x416xf32, #tpu.memory_space<vmem>>, vector<2x256xf32>
    %68 = arith.maximumf %61, %67 : vector<2x256xf32>
    %c0_36 = arith.constant 0 : index
    %c112_37 = arith.constant 112 : index
    %69 = vector.load %arg8[%c0_36, %c112_37] : memref<2x416xf32, #tpu.memory_space<vmem>>, vector<2x256xf32>
    %70 = arith.maximumf %68, %69 : vector<2x256xf32>
    %c0_38 = arith.constant 0 : index
    %c144_39 = arith.constant 144 : index
    %71 = vector.load %arg8[%c0_38, %c144_39] : memref<2x416xf32, #tpu.memory_space<vmem>>, vector<2x256xf32>
    %72 = arith.maximumf %70, %71 : vector<2x256xf32>
    %c0_40 = arith.constant 0 : index
    %c160_41 = arith.constant 160 : index
    %73 = vector.load %arg8[%c0_40, %c160_41] : memref<2x416xf32, #tpu.memory_space<vmem>>, vector<2x256xf32>
    %74 = arith.maximumf %72, %73 : vector<2x256xf32>
    %c2_i32_42 = arith.constant 2 : i32
    %75 = tpu.dynamic_rotate %74 by %c2_i32_42 dim 1 : vector<2x256xf32>, i32 -> vector<2x256xf32>
    %cst_43 = arith.constant 0xFF800000 : f32
    %76 = vector.shape_cast %6 : vector<1x256xi1> to vector<1x256xi1>
    %77 = vector.broadcast %76 : vector<1x256xi1> to vector<2x256xi1>
    %78 = vector.broadcast %cst_43 : f32 to vector<2x256xf32>
    %79 = arith.select %77, %75, %78 : vector<2x256xi1>, vector<2x256xf32>
    %80 = arith.maximumf %74, %79 : vector<2x256xf32>
    %c1_i32_44 = arith.constant 1 : i32
    %81 = tpu.dynamic_rotate %74 by %c1_i32_44 dim 1 : vector<2x256xf32>, i32 -> vector<2x256xf32>
    %cst_45 = arith.constant 0xFF800000 : f32
    %82 = vector.shape_cast %8 : vector<1x256xi1> to vector<1x256xi1>
    %83 = vector.broadcast %82 : vector<1x256xi1> to vector<2x256xi1>
    %84 = vector.broadcast %cst_45 : f32 to vector<2x256xf32>
    %85 = arith.select %83, %81, %84 : vector<2x256xi1>, vector<2x256xf32>
    %86 = arith.maximumf %80, %85 : vector<2x256xf32>
    %c255_i32_46 = arith.constant 255 : i32
    %87 = tpu.dynamic_rotate %74 by %c255_i32_46 dim 1 : vector<2x256xf32>, i32 -> vector<2x256xf32>
    %cst_47 = arith.constant 0xFF800000 : f32
    %88 = vector.shape_cast %10 : vector<1x256xi1> to vector<1x256xi1>
    %89 = vector.broadcast %88 : vector<1x256xi1> to vector<2x256xi1>
    %90 = vector.broadcast %cst_47 : f32 to vector<2x256xf32>
    %91 = arith.select %89, %87, %90 : vector<2x256xi1>, vector<2x256xf32>
    %92 = arith.maximumf %86, %91 : vector<2x256xf32>
    %c254_i32_48 = arith.constant 254 : i32
    %93 = tpu.dynamic_rotate %74 by %c254_i32_48 dim 1 : vector<2x256xf32>, i32 -> vector<2x256xf32>
    %cst_49 = arith.constant 0xFF800000 : f32
    %94 = vector.shape_cast %12 : vector<1x256xi1> to vector<1x256xi1>
    %95 = vector.broadcast %94 : vector<1x256xi1> to vector<2x256xi1>
    %96 = vector.broadcast %cst_49 : f32 to vector<2x256xf32>
    %97 = arith.select %95, %93, %96 : vector<2x256xi1>, vector<2x256xf32>
    %98 = arith.maximumf %92, %97 : vector<2x256xf32>
    %c2 = arith.constant 2 : index
    %c0_50 = arith.constant 0 : index
    %c0_51 = arith.constant 0 : index
    %99 = vector.load %arg4[%c2, %c0_50, %c0_51] : memref<4x8x2xf32, #tpu.memory_space<vmem>>, vector<1x8x2xf32>
    %100 = vector.shape_cast %99 : vector<1x8x2xf32> to vector<8x2xf32>
    %cst_52 = arith.constant dense<0.000000e+00> : vector<8x256xf32>
    %101 = tpu.matmul %100, %98, %cst_52 {dimension_numbers = #tpu.dot_dimension_numbers<[1], [0], [0], [1], [0, 0, 1, 1], [], []>} : vector<8x2xf32>, vector<2x256xf32>, vector<8x256xf32> -> vector<8x256xf32>
    %102 = arith.addf %65, %101 : vector<8x256xf32>
    %c0_53 = arith.constant 0 : index
    %c128_54 = arith.constant 128 : index
    %103 = vector.load %arg8[%c0_53, %c128_54] : memref<2x416xf32, #tpu.memory_space<vmem>>, vector<2x256xf32>
    tpu.vector_store %arg8[%c0_53, %c128_54], %98 {strides = array<i32>} : memref<2x416xf32, #tpu.memory_space<vmem>>, vector<2x256xf32>,
    %c0_55 = arith.constant 0 : index
    %c96_56 = arith.constant 96 : index
    %104 = vector.load %arg8[%c0_55, %c96_56] : memref<2x416xf32, #tpu.memory_space<vmem>>, vector<2x256xf32>
    %105 = arith.maximumf %98, %104 : vector<2x256xf32>
    %c0_57 = arith.constant 0 : index
    %c112_58 = arith.constant 112 : index
    %106 = vector.load %arg8[%c0_57, %c112_58] : memref<2x416xf32, #tpu.memory_space<vmem>>, vector<2x256xf32>
    %107 = arith.maximumf %105, %106 : vector<2x256xf32>
    %c0_59 = arith.constant 0 : index
    %c144_60 = arith.constant 144 : index
    %108 = vector.load %arg8[%c0_59, %c144_60] : memref<2x416xf32, #tpu.memory_space<vmem>>, vector<2x256xf32>
    %109 = arith.maximumf %107, %108 : vector<2x256xf32>
    %c0_61 = arith.constant 0 : index
    %c160_62 = arith.constant 160 : index
    %110 = vector.load %arg8[%c0_61, %c160_62] : memref<2x416xf32, #tpu.memory_space<vmem>>, vector<2x256xf32>
    %111 = arith.maximumf %109, %110 : vector<2x256xf32>
    %c2_i32_63 = arith.constant 2 : i32
    %112 = tpu.dynamic_rotate %111 by %c2_i32_63 dim 1 : vector<2x256xf32>, i32 -> vector<2x256xf32>
    %cst_64 = arith.constant 0xFF800000 : f32
    %113 = vector.shape_cast %6 : vector<1x256xi1> to vector<1x256xi1>
    %114 = vector.broadcast %113 : vector<1x256xi1> to vector<2x256xi1>
    %115 = vector.broadcast %cst_64 : f32 to vector<2x256xf32>
    %116 = arith.select %114, %112, %115 : vector<2x256xi1>, vector<2x256xf32>
    %117 = arith.maximumf %111, %116 : vector<2x256xf32>
    %c1_i32_65 = arith.constant 1 : i32
    %118 = tpu.dynamic_rotate %111 by %c1_i32_65 dim 1 : vector<2x256xf32>, i32 -> vector<2x256xf32>
    %cst_66 = arith.constant 0xFF800000 : f32
    %119 = vector.shape_cast %8 : vector<1x256xi1> to vector<1x256xi1>
    %120 = vector.broadcast %119 : vector<1x256xi1> to vector<2x256xi1>
    %121 = vector.broadcast %cst_66 : f32 to vector<2x256xf32>
    %122 = arith.select %120, %118, %121 : vector<2x256xi1>, vector<2x256xf32>
    %123 = arith.maximumf %117, %122 : vector<2x256xf32>
    %c255_i32_67 = arith.constant 255 : i32
    %124 = tpu.dynamic_rotate %111 by %c255_i32_67 dim 1 : vector<2x256xf32>, i32 -> vector<2x256xf32>
    %cst_68 = arith.constant 0xFF800000 : f32
    %125 = vector.shape_cast %10 : vector<1x256xi1> to vector<1x256xi1>
    %126 = vector.broadcast %125 : vector<1x256xi1> to vector<2x256xi1>
    %127 = vector.broadcast %cst_68 : f32 to vector<2x256xf32>
    %128 = arith.select %126, %124, %127 : vector<2x256xi1>, vector<2x256xf32>
    %129 = arith.maximumf %123, %128 : vector<2x256xf32>
    %c254_i32_69 = arith.constant 254 : i32
    %130 = tpu.dynamic_rotate %111 by %c254_i32_69 dim 1 : vector<2x256xf32>, i32 -> vector<2x256xf32>
    %cst_70 = arith.constant 0xFF800000 : f32
    %131 = vector.shape_cast %12 : vector<1x256xi1> to vector<1x256xi1>
    %132 = vector.broadcast %131 : vector<1x256xi1> to vector<2x256xi1>
    %133 = vector.broadcast %cst_70 : f32 to vector<2x256xf32>
    %134 = arith.select %132, %130, %133 : vector<2x256xi1>, vector<2x256xf32>
    %135 = arith.maximumf %129, %134 : vector<2x256xf32>
    %c3 = arith.constant 3 : index
    %c0_71 = arith.constant 0 : index
    %c0_72 = arith.constant 0 : index
    %136 = vector.load %arg4[%c3, %c0_71, %c0_72] : memref<4x8x2xf32, #tpu.memory_space<vmem>>, vector<1x8x2xf32>
    %137 = vector.shape_cast %136 : vector<1x8x2xf32> to vector<8x2xf32>
    %cst_73 = arith.constant dense<0.000000e+00> : vector<8x256xf32>
    %138 = tpu.matmul %137, %135, %cst_73 {dimension_numbers = #tpu.dot_dimension_numbers<[1], [0], [0], [1], [0, 0, 1, 1], [], []>} : vector<8x2xf32>, vector<2x256xf32>, vector<8x256xf32> -> vector<8x256xf32>
    %139 = arith.addf %102, %138 : vector<8x256xf32>
    %c0_74 = arith.constant 0 : index
    %c0_75 = arith.constant 0 : index
    %140 = vector.load %arg5[%c0_74, %c0_75] : memref<8x1xf32, #tpu.memory_space<vmem>>, vector<8x1xf32>
    %141 = vector.broadcast %140 : vector<8x1xf32> to vector<8x256xf32>
    %142 = arith.addf %139, %141 : vector<8x256xf32>
    %143 = arith.negf %142 : vector<8x256xf32>
    %144 = math.exp %143 : vector<8x256xf32>
    %cst_76 = arith.constant 1.000000e+00 : f32
    %145 = vector.broadcast %cst_76 : f32 to vector<8x256xf32>
    %146 = arith.addf %145, %144 : vector<8x256xf32>
    %147 = arith.divf %145, %146 : vector<8x256xf32>
    %148 = arith.mulf %142, %147 : vector<8x256xf32>
    %c0_77 = arith.constant 0 : index
    %c0_78 = arith.constant 0 : index
    %c0_79 = arith.constant 0 : index
    %149 = vector.load %arg7[%c0_77, %c0_78, %c0_79] : memref<1x8x256xf32, #tpu.memory_space<vmem>>, vector<1x8x256xf32>
    %150 = vector.shape_cast %149 : vector<1x8x256xf32> to vector<8x256xf32>
    %151 = vector.shape_cast %148 : vector<8x256xf32> to vector<1x8x256xf32>
    tpu.vector_store %arg7[%c0_77, %c0_78, %c0_79], %151 {strides = array<i32>} : memref<1x8x256xf32, #tpu.memory_space<vmem>>, vector<1x8x256xf32>,
    return
  }
  func.func @transform_0(%arg0: i32) -> (i32, i32, i32) {
    %c0_i32 = arith.constant 0 : i32
    %c0_i32_0 = arith.constant 0 : i32
    %c0_i32_1 = arith.constant 0 : i32
    return %arg0, %c0_i32, %c0_i32_0 : i32, i32, i32
  }
  func.func @transform_1(%arg0: i32) -> (i32, i32) {
    %c0_i32 = arith.constant 0 : i32
    %c0_i32_0 = arith.constant 0 : i32
    %c0_i32_1 = arith.constant 0 : i32
    return %c0_i32, %c0_i32_0 : i32, i32
  }
  func.func @transform_2(%arg0: i32) -> (i32, i32) {
    %c0_i32 = arith.constant 0 : i32
    %c0_i32_0 = arith.constant 0 : i32
    %c0_i32_1 = arith.constant 0 : i32
    return %c0_i32, %c0_i32_0 : i32, i32
  }
  func.func @transform_3(%arg0: i32) -> (i32, i32, i32) {
    %c0_i32 = arith.constant 0 : i32
    %c0_i32_0 = arith.constant 0 : i32
    %c0_i32_1 = arith.constant 0 : i32
    %c0_i32_2 = arith.constant 0 : i32
    return %c0_i32, %c0_i32_0, %c0_i32_1 : i32, i32, i32
  }
  func.func @transform_4(%arg0: i32) -> (i32, i32) {
    %c0_i32 = arith.constant 0 : i32
    %c0_i32_0 = arith.constant 0 : i32
    %c0_i32_1 = arith.constant 0 : i32
    return %c0_i32, %c0_i32_0 : i32, i32
  }
  func.func @transform_5(%arg0: i32) -> (i32, i32) {
    %c0_i32 = arith.constant 0 : i32
    %c0_i32_0 = arith.constant 0 : i32
    %c0_i32_1 = arith.constant 0 : i32
    return %c0_i32, %c0_i32_0 : i32, i32
  }
  func.func @transform_6(%arg0: i32) -> (i32, i32, i32) {
    %c0_i32 = arith.constant 0 : i32
    %c0_i32_0 = arith.constant 0 : i32
    %c0_i32_1 = arith.constant 0 : i32
    return %arg0, %c0_i32, %c0_i32_0 : i32, i32, i32
  }
}

</mosaic_0001>

<llo_original>
// kernel: tpu_custom_call.1
$region0: #{tpu_custom_call.1}
  #allocation0 [shape = 'u32[]', space=smem, size = 0x4, offset = 0x4, fixed_abs, tag = 'smem constant byte address 0x4 - core index']
  #allocation1 [shape = 'u32[144,128]{1,0:T(1,128)}', space=vmem, size = 0x12000, scoped, tag = 'internal scratch']
  #allocation2 [shape = 'f32[2,416]{1,0:T(2,128)}', space=vmem, size = 0x1000, scoped, tag = 'scratch operand']
  %s0 = inlined_call_operand.vmem [shape: f32[2,4,256], index: 0, kind: input, shape index: {}]
  %s1 = inlined_call_operand.vmem [shape: f32[2,4], index: 1, kind: input, shape index: {}]
  %s2 = inlined_call_operand.vmem [shape: f32[2,1], index: 2, kind: input, shape index: {}]
  %s3 = inlined_call_operand.vmem [shape: f32[4,8,2], index: 3, kind: input, shape index: {}]
  %s4 = inlined_call_operand.vmem [shape: f32[8,1], index: 4, kind: input, shape index: {}]
  %s5 = inlined_call_operand.vmem [shape: s32[1,256], index: 5, kind: input, shape index: {}]
  %s6 = inlined_call_operand.hbm [shape: f32[2,8,256], index: 6, kind: output, shape index: {}]
  %s7 = sld [smem:[#allocation0]]
  $region57: #{tpu_custom_call.1} parent=0
    _
  %s9 = ssub.s32 1, %s7
  %s10 = scalar_select 0, %s9, %s7
  $region1: #{tpu_custom_call.1} parent=0
    #allocation3 [shape = 'u8[16384]{0}', space=vmem, size = 0x4000, scoped, tag = 'output window, operand 0']
    #allocation4 [shape = 's32[2]{0}', space=sflag, size = 0x8, scoped, tag = 'scoped memory for tpu_custom_call.1']
    %11 = vsyncpa [#allocation4], 0
    %s12 = scalar_lea.sflag [#allocation4], 1
    %13 = vsyncpa %s12, 0
    loop: start=0, step=1, limit=4
    $region2: #{tpu_custom_call.1} parent=1 // loop_pre_header
      _
    $region3: #{tpu_custom_call.1} parent=1 // loop_header
      %s15 = sphi 0, %s19
      %p16 = scmp.ge.s32.totalorder %s15, 4
      %s25 = sphi 0, %s27
      %s28 = sphi 0, %s25
      %s29 = sphi 0, %s28
      %s45 = sphi 0, %s29
      %s49 = sphi 0, %s49
      %s51 = sphi 0, %s49
      %s52 = sphi 0, %s51
      %s66 = sphi 0, %s52
      %s70 = sphi 0, %s70
      %s72 = sphi 0, %s70
      %s73 = sphi 0, %s72
      %s87 = sphi 0, %s73
      %s91 = sphi 0, %s91
      %s93 = sphi 0, %s91
      %s94 = sphi 0, %s93
      %s108 = sphi 0, %s94
      %s112 = sphi 0, %s112
      %s114 = sphi 0, %s112
      %s115 = sphi 0, %s114
      %s129 = sphi 0, %s115
      %s133 = sphi 0, %s133
      %s135 = sphi 0, %s133
      %s136 = sphi 0, %s135
      %s150 = sphi 0, %s136
      %s156 = sphi 0, %s158
      %s159 = sphi 0, %s156
      %s160 = sphi 0, %s159
      %s176 = sphi 0, %s160
    $region4: #{tpu_custom_call.1} parent=1 // loop_header_branch
      %18 = sbr.rel (%p16) target = $region8
    $region5: #{tpu_custom_call.1} parent=1 // loop_body
      %s20 = ssub.s32 %s15, 1
      %s21 = ssub.s32 %s15, 2
      %s22 = sadd.s32 %s15, 1
      %s23 = ssub.s32 %s15, %s22
      %p24 = scmp.eq.s32.totalorder %s23, 0
      %s26 = sadd.s32 %s25, 1
      %s27 = scalar_select %p24, %s25, %s26
      %p30 = pneg %p24
      %p31 = scmp.eq.s32.totalorder %s15, 1
      %p32 = por %p30, %p31
      %p33 = scmp.ne.s32.totalorder %s25, %s28
      %p34 = scmp.eq.s32.totalorder %s15, 0
      %p35 = por %p33, %p34
      %p36 = scmp.ne.s32.totalorder %s25, %s28
      %p37 = scmp.eq.s32.totalorder %s20, 1
      %p38 = por %p36, %p37
      %p39 = scmp.ne.s32.totalorder %s28, %s29
      %p40 = scmp.eq.s32.totalorder %s20, 0
      %p41 = por %p39, %p40
      %p42 = scmp.ne.s32.totalorder %s28, %s29
      %p43 = scmp.eq.s32.totalorder %s21, 1
      %p44 = por %p42, %p43
      %p46 = scmp.ne.s32.totalorder %s29, %s45
      %p47 = scmp.eq.s32.totalorder %s21, 0
      %p48 = por %p46, %p47
      %s50 = sadd.s32 %s49, 1
      %p53 = scmp.eq.s32.totalorder %s15, 1
      %p54 = scmp.ne.s32.totalorder %s49, %s51
      %p55 = scmp.eq.s32.totalorder %s15, 0
      %p56 = por %p54, %p55
      %p57 = scmp.ne.s32.totalorder %s49, %s51
      %p58 = scmp.eq.s32.totalorder %s20, 1
      %p59 = por %p57, %p58
      %p60 = scmp.ne.s32.totalorder %s51, %s52
      %p61 = scmp.eq.s32.totalorder %s20, 0
      %p62 = por %p60, %p61
      %p63 = scmp.ne.s32.totalorder %s51, %s52
      %p64 = scmp.eq.s32.totalorder %s21, 1
      %p65 = por %p63, %p64
      %p67 = scmp.ne.s32.totalorder %s52, %s66
      %p68 = scmp.eq.s32.totalorder %s21, 0
      %p69 = por %p67, %p68
      %s71 = sadd.s32 %s70, 1
      %p74 = scmp.eq.s32.totalorder %s15, 1
      %p75 = scmp.ne.s32.totalorder %s70, %s72
      %p76 = scmp.eq.s32.totalorder %s15, 0
      %p77 = por %p75, %p76
      %p78 = scmp.ne.s32.totalorder %s70, %s72
      %p79 = scmp.eq.s32.totalorder %s20, 1
      %p80 = por %p78, %p79
      %p81 = scmp.ne.s32.totalorder %s72, %s73
      %p82 = scmp.eq.s32.totalorder %s20, 0
      %p83 = por %p81, %p82
      %p84 = scmp.ne.s32.totalorder %s72, %s73
      %p85 = scmp.eq.s32.totalorder %s21, 1
      %p86 = por %p84, %p85
      %p88 = scmp.ne.s32.totalorder %s73, %s87
      %p89 = scmp.eq.s32.totalorder %s21, 0
      %p90 = por %p88, %p89
      %s92 = sadd.s32 %s91, 1
      %p95 = scmp.eq.s32.totalorder %s15, 1
      %p96 = scmp.ne.s32.totalorder %s91, %s93
      %p97 = scmp.eq.s32.totalorder %s15, 0
      %p98 = por %p96, %p97
      %p99 = scmp.ne.s32.totalorder %s91, %s93
      %p100 = scmp.eq.s32.totalorder %s20, 1
      %p101 = por %p99, %p100
      %p102 = scmp.ne.s32.totalorder %s93, %s94
      %p103 = scmp.eq.s32.totalorder %s20, 0
      %p104 = por %p102, %p103
      %p105 = scmp.ne.s32.totalorder %s93, %s94
      %p106 = scmp.eq.s32.totalorder %s21, 1
      %p107 = por %p105, %p106
      %p109 = scmp.ne.s32.totalorder %s94, %s108
      %p110 = scmp.eq.s32.totalorder %s21, 0
      %p111 = por %p109, %p110
      %s113 = sadd.s32 %s112, 1
      %p116 = scmp.eq.s32.totalorder %s15, 1
      %p117 = scmp.ne.s32.totalorder %s112, %s114
      %p118 = scmp.eq.s32.totalorder %s15, 0
      %p119 = por %p117, %p118
      %p120 = scmp.ne.s32.totalorder %s112, %s114
      %p121 = scmp.eq.s32.totalorder %s20, 1
      %p122 = por %p120, %p121
      %p123 = scmp.ne.s32.totalorder %s114, %s115
      %p124 = scmp.eq.s32.totalorder %s20, 0
      %p125 = por %p123, %p124
      %p126 = scmp.ne.s32.totalorder %s114, %s115
      %p127 = scmp.eq.s32.totalorder %s21, 1
      %p128 = por %p126, %p127
      %p130 = scmp.ne.s32.totalorder %s115, %s129
      %p131 = scmp.eq.s32.totalorder %s21, 0
      %p132 = por %p130, %p131
      %s134 = sadd.s32 %s133, 1
      %p137 = scmp.eq.s32.totalorder %s15, 1
      %p138 = scmp.ne.s32.totalorder %s133, %s135
      %p139 = scmp.eq.s32.totalorder %s15, 0
      %p140 = por %p138, %p139
      %p141 = scmp.ne.s32.totalorder %s133, %s135
      %p142 = scmp.eq.s32.totalorder %s20, 1
      %p143 = por %p141, %p142
      %p144 = scmp.ne.s32.totalorder %s135, %s136
      %p145 = scmp.eq.s32.totalorder %s20, 0
      %p146 = por %p144, %p145
      %p147 = scmp.ne.s32.totalorder %s135, %s136
      %p148 = scmp.eq.s32.totalorder %s21, 1
      %p149 = por %p147, %p148
      %p151 = scmp.ne.s32.totalorder %s136, %s150
      %p152 = scmp.eq.s32.totalorder %s21, 0
      %p153 = por %p151, %p152
      %s154 = ssub.s32 %s15, %s22
      %p155 = scmp.eq.s32.totalorder %s154, 0
      %s157 = sadd.s32 %s156, 1
      %s158 = scalar_select %p155, %s156, %s157
      %p161 = pneg %p155
      %p162 = scmp.eq.s32.totalorder %s15, 1
      %p163 = por %p161, %p162
      %p164 = scmp.ne.s32.totalorder %s156, %s159
      %p165 = scmp.eq.s32.totalorder %s15, 0
      %p166 = por %p164, %p165
      %p167 = scmp.ne.s32.totalorder %s156, %s159
      %p168 = scmp.eq.s32.totalorder %s20, 1
      %p169 = por %p167, %p168
      %p170 = scmp.ne.s32.totalorder %s159, %s160
      %p171 = scmp.eq.s32.totalorder %s20, 0
      %p172 = por %p170, %p171
      %p173 = scmp.ne.s32.totalorder %s159, %s160
      %p174 = scmp.eq.s32.totalorder %s21, 1
      %p175 = por %p173, %p174
      %p177 = scmp.ne.s32.totalorder %s160, %s176
      %p178 = scmp.eq.s32.totalorder %s21, 0
      %p179 = por %p177, %p178
      %p180 = scmp.le.s32.totalorder 1, %s15
      %p181 = scmp.lt.s32.totalorder %s15, 3
      %p182 = pnand %p180, %p181
      %p183 = pneg %p182
      // Predicated region
      $region9: #{tpu_custom_call.1} parent=5 // pred_check
        _
      $region10: #{tpu_custom_call.1} parent=5 // pred_check_branch
        %185 = sbr.rel (%p182) target = $region12
      $region11: #{tpu_custom_call.1} parent=5 // pred_region
        %s186 = ssub.s32 %s15, 1
        // Predicated region
        $region13: #{tpu_custom_call.1} parent=11 // pred_check
          %p187 = pneg %p62
        $region14: #{tpu_custom_call.1} parent=11 // pred_check_branch
          %189 = sbr.rel (%p187) target = $region16
        $region15: #{tpu_custom_call.1} parent=11 // pred_region
          _
        $region16: #{tpu_custom_call.1} parent=11 // pred_fallthru
          _
        // Predicated region
        $region17: #{tpu_custom_call.1} parent=11 // pred_check
          %p190 = pneg %p83
        $region18: #{tpu_custom_call.1} parent=11 // pred_check_branch
          %192 = sbr.rel (%p190) target = $region20
        $region19: #{tpu_custom_call.1} parent=11 // pred_region
          _
        $region20: #{tpu_custom_call.1} parent=11 // pred_fallthru
          _
        // Predicated region
        $region21: #{tpu_custom_call.1} parent=11 // pred_check
          %p193 = pneg %p104
        $region22: #{tpu_custom_call.1} parent=11 // pred_check_branch
          %195 = sbr.rel (%p193) target = $region24
        $region23: #{tpu_custom_call.1} parent=11 // pred_region
          _
        $region24: #{tpu_custom_call.1} parent=11 // pred_fallthru
          _
        // Predicated region
        $region25: #{tpu_custom_call.1} parent=11 // pred_check
          %p196 = pneg %p125
        $region26: #{tpu_custom_call.1} parent=11 // pred_check_branch
          %198 = sbr.rel (%p196) target = $region28
        $region27: #{tpu_custom_call.1} parent=11 // pred_region
          _
        $region28: #{tpu_custom_call.1} parent=11 // pred_fallthru
          _
        // Predicated region
        $region29: #{tpu_custom_call.1} parent=11 // pred_check
          %p199 = pneg %p146
        $region30: #{tpu_custom_call.1} parent=11 // pred_check_branch
          %201 = sbr.rel (%p199) target = $region32
        $region31: #{tpu_custom_call.1} parent=11 // pred_region
          _
        $region32: #{tpu_custom_call.1} parent=11 // pred_fallthru
          _
      $region12: #{tpu_custom_call.1} parent=5 // pred_fallthru
        _
      %p202 = scmp.lt.s32.totalorder %s15, 2
      // Predicated region
      $region33: #{tpu_custom_call.1} parent=5 // pred_check
        %p203 = pneg %p202
      $region34: #{tpu_custom_call.1} parent=5 // pred_check_branch
        %205 = sbr.rel (%p203) target = $region36
      $region35: #{tpu_custom_call.1} parent=5 // pred_region
        // Predicated region
        $region37: #{tpu_custom_call.1} parent=35 // pred_check
          %p206 = pneg %p35
        $region38: #{tpu_custom_call.1} parent=35 // pred_check_branch
          %208 = sbr.rel (%p206) target = $region40
        $region39: #{tpu_custom_call.1} parent=35 // pred_region
          %p209 = scmp.lt.s32.totalorder %s15, 1
          %s210 = scalar_select %p209, %s15, 1
          %s211 = smul.addr %s210, 2
          %s212 = smul.addr %s211, 4
          %s213 = scalar_lea.vmem %s0, %s212
        $region40: #{tpu_custom_call.1} parent=35 // pred_fallthru
          _
      $region36: #{tpu_custom_call.1} parent=5 // pred_fallthru
        _
      %p214 = scmp.le.s32.totalorder 1, %s15
      %p215 = scmp.lt.s32.totalorder %s15, 3
      %p216 = pnand %p214, %p215
      %p217 = pneg %p216
      // Predicated region
      $region41: #{tpu_custom_call.1} parent=5 // pred_check
        _
      $region42: #{tpu_custom_call.1} parent=5 // pred_check_branch
        %219 = sbr.rel (%p216) target = $region44
      $region43: #{tpu_custom_call.1} parent=5 // pred_region
        %s220 = ssub.s32 %s15, 1
        %p221 = scmp.lt.s32.totalorder %s20, 1
        %s222 = scalar_select %p221, %s20, 1
        %s223 = smul.addr %s222, 2
        %s224 = smul.addr %s223, 4
        %s225 = scalar_lea.vmem %s0, %s224
        %p226 = pneg %p41
        %p227 = pneg %p38
        %p228 = pneg %p62
        %p229 = pneg %p59
        %p230 = pneg %p83
        %p231 = pneg %p80
        %p232 = pneg %p104
        %p233 = pneg %p101
        %p234 = pneg %p125
        %p235 = pneg %p122
        %p236 = pneg %p146
        %p237 = pneg %p143
        %p238 = pneg %p172
        %p239 = pneg %p169
        %s240 = sand.u32 %s159, 1
        %s241 = scalar_lea.sflag [#allocation4], %s240
        %s242 = sand.u32 %s159, 1
        %s243 = smul.addr %s242, 16
        %s244 = scalar_lea.vmem [#allocation3], %s243
        %p245 = scmp.lt.s32.totalorder %s20, 1
        %s246 = scalar_select %p245, %s20, 1
        %s247 = smul.addr %s246, 2
        %s248 = smul.addr %s247, 4
        %s249 = scalar_lea.vmem %s0, %s248
        %250 = vst [vmem:[#allocation2] sm:$0x3] -inf
        %vm251 = vcmask 254976
        %252 = vst.msk [vmem:[#allocation2 + $0x6] sm:$0x3] %vm251, -inf
        %v253 = vld [vmem:[%s5] sm:$0x3]
        %vm254 = vcmp.ge.s32.totalorder %v253, 2
        %vm255 = vcmp.ge.s32.totalorder %v253, 1
        %vm256 = vcmp.lt.s32.totalorder %v253, 15
        %vm257 = vcmp.lt.s32.totalorder %v253, 14
        %v258 = vld [vmem:[%s1] sm:$0x3]
        %v259 = vld [vmem:[%s249] sm:$0xff]
        %v260 = vld [vmem:[%s2] sm:$0x3]
        %262 = vset.pattern.permute.xlu0 0
        %263 = vperm.xlu0 %262, %v260
        %v264 = vpop.permute.xlu0 %263
        %v267 = vcombine.high %v259, %v259
        %vm268 = vcmask 31744
        %v270 = vsel %vm268, %v258, 0
        %vm272 = vcmask 1043456
        %v273 = vsel %vm272, %v259, 0
        %v275 = vsel %vm272, %v267, 0
        %277 = vmatprep.subr.mxu0 0.0
        %278 = vmatpush1.msra.mxu0 0.0
        %279 = vmatprep.subr.mxu0 0.0
        %280 = vmatpush1.msra.mxu0 0.0
        %281 = vmatprep.subr.mxu0 0.0
        %282 = vmatpush1.msra.mxu0 0.0
        %283 = vmatprep.subr.mxu0 0.0
        %284 = vmatpush1.msra.mxu0 0.0
        %285 = vmatprep.subr.mxu0 0.0
        %286 = vmatpush1.msra.mxu0 0.0
        %287 = vmatprep.subr.mxu0 0.0
        %288 = vmatpush1.msra.mxu0 0.0
        %289 = vmatprep.subr.mxu0 0.0
        %290 = vmatpush1.msra.mxu0 0.0
        %291 = vmatprep.subr.mxu0 0.0
        %292 = vmatpush1.msra.mxu0 0.0
        %293 = vmatprep.subr.mxu0 0.0
        %294 = vmatpush1.msra.mxu0 0.0
        %295 = vmatprep.subr.mxu0 0.0
        %296 = vmatpush1.msra.mxu0 0.0
        %297 = vmatprep.subr.mxu0 0.0
        %298 = vmatpush1.msra.mxu0 0.0
        %299 = vmatprep.subr.mxu0 0.0
        %300 = vmatpush1.msra.mxu0 0.0
        %301 = vmatprep.subr.mxu0 0.0
        %302 = vmatpush1.msra.mxu0 0.0
        %303 = vmatprep.subr.mxu0 0.0
        %304 = vmatpush1.msra.mxu0 0.0
        %305 = vmatprep.subr.mxu0 0.0
        %306 = vmatpush1.msra.mxu0 0.0
        %307 = vmatprep.subr.mxu0 %v275
        %308 = vmatpush1.msra.mxu0 %v273
        %309 = vmatprep.subr.mxu0 0.0
        %310 = vmatpush2.msra.mxu0 0.0
        %311 = vmatprep.subr.mxu0 0.0
        %312 = vmatpush2.msra.mxu0 0.0
        %313 = vmatprep.subr.mxu0 0.0
        %314 = vmatpush2.msra.mxu0 0.0
        %315 = vmatprep.subr.mxu0 0.0
        %316 = vmatpush2.msra.mxu0 0.0
        %317 = vmatprep.subr.mxu0 0.0
        %318 = vmatpush2.msra.mxu0 0.0
        %319 = vmatprep.subr.mxu0 0.0
        %320 = vmatpush2.msra.mxu0 0.0
        %321 = vmatprep.subr.mxu0 0.0
        %322 = vmatpush2.msra.mxu0 0.0
        %323 = vmatprep.subr.mxu0 0.0
        %324 = vmatpush2.msra.mxu0 0.0
        %325 = vmatprep.subr.mxu0 0.0
        %326 = vmatpush2.msra.mxu0 0.0
        %327 = vmatprep.subr.mxu0 0.0
        %328 = vmatpush2.msra.mxu0 0.0
        %329 = vmatprep.subr.mxu0 0.0
        %330 = vmatpush2.msra.mxu0 0.0
        %331 = vmatprep.subr.mxu0 0.0
        %332 = vmatpush2.msra.mxu0 0.0
        %333 = vmatprep.subr.mxu0 0.0
        %334 = vmatpush2.msra.mxu0 0.0
        %335 = vmatprep.subr.mxu0 0.0
        %336 = vmatpush2.msra.mxu0 0.0
        %337 = vmatprep.subr.mxu0 0.0
        %338 = vmatpush2.msra.mxu0 0.0
        %339 = vmatprep.subr.mxu0 0.0
        %340 = vmatpush2.msra.mxu0 0.0
        %341 = vmatprep.mubr.f32.mxu0 0.0
        %342 = vmatmul.mubr.f32.gmra.mxu0 %v270
        %v343 = vpop.f32.mrf.mxu0
        %v344 = vadd.f32 %v264, %v343
        %v345 = vpop.f32.mrf.mxu0
        %v346 = vadd.f32 %v264, %v345
        %347 = vdwg.mxu0
        %v348 = vxor.u32 %v344, 2147483648
        %v349 = vxor.u32 %v346, 2147483648
        %v350 = vmul.f32 %v348, 1.442695
        %v351 = vpow.pop %v350
        %v352 = vmul.f32 %v349, 1.442695
        %v353 = vpow.pop %v352
        %v354 = vadd.f32 %v351, 1.0
        %v355 = vadd.f32 %v353, 1.0
        %v356 = vrcp.pop %v354
        %v357 = vmul.f32 1.0, %v356
        %v358 = vrcp.pop %v355
        %v359 = vmul.f32 1.0, %v358
        %v360 = vmul.f32 %v344, %v357
        %v361 = vmul.f32 %v346, %v359
        %v362 = vld [vmem:[%s3] sm:$0xff]
        %v365 = vcombine.low %v360, %v361
        %v367 = vunpack.c.l.s4 1983009808
        %v368 = vunpack.c.0.s8 %v367
        %v369 = vlaneseq
        %v370 = vshrl.u32 %v369, 7
        %v371 = vsub.s32 %v368, %v370
        %v372 = vrot.slane %v365, %v371
        %374 = vst [vmem:[#allocation2 + $0x2] sm:$0xf] %v372
        %v375 = vld [vmem:[#allocation2] sm:$0x3f]
        %v377 = vcombine.high %v375, %v375
        %v379 = vunpack.c.l.s4 1983009808
        %v380 = vunpack.c.0.s8 %v379
        %v381 = vlaneseq
        %v382 = vshrl.u32 %v381, 7
        %v383 = vsub.s32 %v380, %v382
        %v384 = vrot.slane %v375, %v383
        %v386 = vunpack.c.l.s4 1983009808
        %v387 = vunpack.c.0.s8 %v386
        %v388 = vlaneseq
        %v389 = vshrl.u32 %v388, 7
        %v390 = vsub.s32 %v387, %v389
        %v391 = vrot.slane %v377, %v390
        %v392 = vcombine.high %v384, %v384
        %393 = vrot.lane.b32.xlu0 %v384, 32
        %v394 = vpop.permute.xlu0 %393
        %395 = vrot.lane.b32.xlu0 %v392, 32
        %v396 = vpop.permute.xlu0 %395
        %397 = vrot.lane.b32.xlu0 %v391, 32
        %v398 = vpop.permute.xlu0 %397
        %vm399 = vcmask 261120
        %v400 = vsel %vm399, %v394, %v396
        %v401 = vsel %vm399, %v396, %v398
        %v404 = vmax.f32 %v360, %v400
        %v405 = vmax.f32 %v361, %v401
        %406 = vrot.lane.b32.xlu0 %v384, 16
        %v407 = vpop.permute.xlu0 %406
        %408 = vrot.lane.b32.xlu0 %v392, 16
        %v409 = vpop.permute.xlu0 %408
        %410 = vrot.lane.b32.xlu0 %v391, 16
        %v411 = vpop.permute.xlu0 %410
        %vm412 = vcmask 130048
        %v413 = vsel %vm412, %v407, %v409
        %v414 = vsel %vm412, %v409, %v411
        %v417 = vmax.f32 %v404, %v413
        %v418 = vmax.f32 %v405, %v414
        %v419 = vld [vmem:[#allocation2 + $0x2] sm:$0x3f]
        %v421 = vcombine.high %v419, %v419
        %v423 = vunpack.c.l.s4 1983009808
        %v424 = vunpack.c.0.s8 %v423
        %v425 = vlaneseq
        %v426 = vshrl.u32 %v425, 7
        %v427 = vsub.s32 %v424, %v426
        %v428 = vrot.slane %v419, %v427
        %v430 = vunpack.c.l.s4 1983009808
        %v431 = vunpack.c.0.s8 %v430
        %v432 = vlaneseq
        %v433 = vshrl.u32 %v432, 7
        %v434 = vsub.s32 %v431, %v433
        %v435 = vrot.slane %v421, %v434
        %v436 = vcombine.high %v428, %v428
        %437 = vrot.lane.b32.xlu0 %v428, 112
        %v438 = vpop.permute.xlu0 %437
        %439 = vrot.lane.b32.xlu0 %v436, 112
        %v440 = vpop.permute.xlu0 %439
        %441 = vrot.lane.b32.xlu0 %v435, 112
        %v442 = vpop.permute.xlu0 %441
        %vm443 = vcmask 916480
        %v444 = vsel %vm443, %v438, %v440
        %v445 = vsel %vm443, %v440, %v442
        %v448 = vmax.f32 %v417, %v444
        %v449 = vmax.f32 %v418, %v445
        %450 = vrot.lane.b32.xlu0 %v428, 96
        %v451 = vpop.permute.xlu0 %450
        %452 = vrot.lane.b32.xlu0 %v436, 96
        %v453 = vpop.permute.xlu0 %452
        %454 = vrot.lane.b32.xlu0 %v435, 96
        %v455 = vpop.permute.xlu0 %454
        %vm456 = vcmask 785408
        %v457 = vsel %vm456, %v451, %v453
        %v458 = vsel %vm456, %v453, %v455
        %v461 = vmax.f32 %v448, %v457
        %v462 = vmax.f32 %v449, %v458
        %463 = vrot.lane.b32.xlu0 %v461, 2
        %v464 = vpop.permute.xlu0 %463
        %465 = vrot.lane.b32.xlu0 %v462, 2
        %v466 = vpop.permute.xlu0 %465
        %v467 = vlaneseq
        %v468 = vand.u32 %v467, 127
        %vm469 = vcmp.lt.s32.totalorder %v468, 2
        %v470 = vsel %vm469, %v464, %v466
        %v471 = vsel %vm469, %v466, %v464
        %v472 = vsel %vm254, 1, 0
        %v473 = vlaneseq
        %v474 = vshrl.u32 %v473, 7
        %v475 = vsub.s32 0, %v474
        %v476 = vrot.slane %v472, %v475
        %v477 = vlaneseq
        %v478 = vshrl.u32 %v477, 7
        %v479 = vsub.s32 1, %v478
        %v480 = vrot.slane %v472, %v479
        %vm481 = vcmp.eq.s32.totalorder %v476, 1
        %vm482 = vcmp.eq.s32.totalorder %v480, 1
        %v483 = vsel %vm481, %v471, -inf
        %v484 = vsel %vm482, %v470, -inf
        %v485 = vmax.f32 %v461, %v483
        %v486 = vmax.f32 %v462, %v484
        %487 = vrot.lane.b32.xlu0 %v461, 1
        %v488 = vpop.permute.xlu0 %487
        %489 = vrot.lane.b32.xlu0 %v462, 1
        %v490 = vpop.permute.xlu0 %489
        %vm491 = vcmp.lt.s32.totalorder %v468, 1
        %v492 = vsel %vm491, %v488, %v490
        %v493 = vsel %vm491, %v490, %v488
        %v494 = vsel %vm255, 1, 0
        %v495 = vlaneseq
        %v496 = vshrl.u32 %v495, 7
        %v497 = vsub.s32 0, %v496
        %v498 = vrot.slane %v494, %v497
        %v499 = vlaneseq
        %v500 = vshrl.u32 %v499, 7
        %v501 = vsub.s32 1, %v500
        %v502 = vrot.slane %v494, %v501
        %vm503 = vcmp.eq.s32.totalorder %v498, 1
        %vm504 = vcmp.eq.s32.totalorder %v502, 1
        %v505 = vsel %vm503, %v493, -inf
        %v506 = vsel %vm504, %v492, -inf
        %v507 = vmax.f32 %v485, %v505
        %v508 = vmax.f32 %v486, %v506
        %509 = vrot.lane.b32.xlu0 %v461, 127
        %v510 = vpop.permute.xlu0 %509
        %511 = vrot.lane.b32.xlu0 %v462, 127
        %v512 = vpop.permute.xlu0 %511
        %vm513 = vcmp.lt.s32.totalorder %v468, 127
        %v514 = vsel %vm513, %v510, %v512
        %v515 = vsel %vm513, %v512, %v510
        %v516 = vsel %vm256, 1, 0
        %v517 = vlaneseq
        %v518 = vshrl.u32 %v517, 7
        %v519 = vsub.s32 0, %v518
        %v520 = vrot.slane %v516, %v519
        %v521 = vlaneseq
        %v522 = vshrl.u32 %v521, 7
        %v523 = vsub.s32 1, %v522
        %v524 = vrot.slane %v516, %v523
        %vm525 = vcmp.eq.s32.totalorder %v520, 1
        %vm526 = vcmp.eq.s32.totalorder %v524, 1
        %v527 = vsel %vm525, %v514, -inf
        %v528 = vsel %vm526, %v515, -inf
        %v529 = vmax.f32 %v507, %v527
        %v530 = vmax.f32 %v508, %v528
        %531 = vrot.lane.b32.xlu0 %v461, 126
        %v532 = vpop.permute.xlu0 %531
        %533 = vrot.lane.b32.xlu0 %v462, 126
        %v534 = vpop.permute.xlu0 %533
        %vm535 = vcmp.lt.s32.totalorder %v468, 126
        %v536 = vsel %vm535, %v532, %v534
        %v537 = vsel %vm535, %v534, %v532
        %v538 = vsel %vm257, 1, 0
        %v539 = vlaneseq
        %v540 = vshrl.u32 %v539, 7
        %v541 = vsub.s32 0, %v540
        %v542 = vrot.slane %v538, %v541
        %v543 = vlaneseq
        %v544 = vshrl.u32 %v543, 7
        %v545 = vsub.s32 1, %v544
        %v546 = vrot.slane %v538, %v545
        %vm547 = vcmp.eq.s32.totalorder %v542, 1
        %vm548 = vcmp.eq.s32.totalorder %v546, 1
        %v549 = vsel %vm547, %v536, -inf
        %v550 = vsel %vm548, %v537, -inf
        %v551 = vmax.f32 %v529, %v549
        %v552 = vmax.f32 %v530, %v550
        %s553 = scalar_lea.vmem %s3, 8
        %v554 = vld [vmem:[%s553] sm:$0xff]
        %vm555 = vcmask 15360
        %v557 = vsel %vm555, %v554, 0
        %vm559 = vcmask 1041408
        %v561 = vsel %vm559, %v551, 0
        %v564 = vsel %vm559, %v552, 0
        %566 = vmatprep.subr.mxu0 0.0
        %567 = vmatpush1.msra.mxu0 0.0
        %568 = vmatprep.subr.mxu0 0.0
        %569 = vmatpush1.msra.mxu0 0.0
        %570 = vmatprep.subr.mxu0 0.0
        %571 = vmatpush1.msra.mxu0 0.0
        %572 = vmatprep.subr.mxu0 0.0
        %573 = vmatpush1.msra.mxu0 0.0
        %574 = vmatprep.subr.mxu0 0.0
        %575 = vmatpush1.msra.mxu0 0.0
        %576 = vmatprep.subr.mxu0 0.0
        %577 = vmatpush1.msra.mxu0 0.0
        %578 = vmatprep.subr.mxu0 0.0
        %579 = vmatpush1.msra.mxu0 0.0
        %580 = vmatprep.subr.mxu0 0.0
        %581 = vmatpush1.msra.mxu0 0.0
        %582 = vmatprep.subr.mxu0 0.0
        %583 = vmatpush1.msra.mxu0 0.0
        %584 = vmatprep.subr.mxu0 0.0
        %585 = vmatpush1.msra.mxu0 0.0
        %586 = vmatprep.subr.mxu0 0.0
        %587 = vmatpush1.msra.mxu0 0.0
        %588 = vmatprep.subr.mxu0 0.0
        %589 = vmatpush1.msra.mxu0 0.0
        %590 = vmatprep.subr.mxu0 0.0
        %591 = vmatpush1.msra.mxu0 0.0
        %592 = vmatprep.subr.mxu0 0.0
        %593 = vmatpush1.msra.mxu0 0.0
        %594 = vmatprep.subr.mxu0 0.0
        %595 = vmatpush1.msra.mxu0 0.0
        %596 = vmatprep.subr.mxu0 %v564
        %597 = vmatpush1.msra.mxu0 %v561
        %598 = vmatprep.subr.mxu0 0.0
        %599 = vmatpush2.msra.mxu0 0.0
        %600 = vmatprep.subr.mxu0 0.0
        %601 = vmatpush2.msra.mxu0 0.0
        %602 = vmatprep.subr.mxu0 0.0
        %603 = vmatpush2.msra.mxu0 0.0
        %604 = vmatprep.subr.mxu0 0.0
        %605 = vmatpush2.msra.mxu0 0.0
        %606 = vmatprep.subr.mxu0 0.0
        %607 = vmatpush2.msra.mxu0 0.0
        %608 = vmatprep.subr.mxu0 0.0
        %609 = vmatpush2.msra.mxu0 0.0
        %610 = vmatprep.subr.mxu0 0.0
        %611 = vmatpush2.msra.mxu0 0.0
        %612 = vmatprep.subr.mxu0 0.0
        %613 = vmatpush2.msra.mxu0 0.0
        %614 = vmatprep.subr.mxu0 0.0
        %615 = vmatpush2.msra.mxu0 0.0
        %616 = vmatprep.subr.mxu0 0.0
        %617 = vmatpush2.msra.mxu0 0.0
        %618 = vmatprep.subr.mxu0 0.0
        %619 = vmatpush2.msra.mxu0 0.0
        %620 = vmatprep.subr.mxu0 0.0
        %621 = vmatpush2.msra.mxu0 0.0
        %622 = vmatprep.subr.mxu0 0.0
        %623 = vmatpush2.msra.mxu0 0.0
        %624 = vmatprep.subr.mxu0 0.0
        %625 = vmatpush2.msra.mxu0 0.0
        %626 = vmatprep.subr.mxu0 0.0
        %627 = vmatpush2.msra.mxu0 0.0
        %628 = vmatprep.subr.mxu0 0.0
        %629 = vmatpush2.msra.mxu0 0.0
        %630 = vmatprep.mubr.f32.mxu0 0.0
        %631 = vmatmul.mubr.f32.gmra.mxu0 %v557
        %v632 = vpop.f32.mrf.mxu0
        %v633 = vadd.f32 0.0, %v632
        %v634 = vpop.f32.mrf.mxu0
        %v635 = vadd.f32 0.0, %v634
        %636 = vdwg.mxu0
        %v638 = vsel %vm555, %v362, 0
        %v640 = vsel %vm559, %v360, 0
        %v642 = vsel %vm559, %v361, 0
        %644 = vmatprep.subr.mxu0 0.0
        %645 = vmatpush1.msra.mxu0 0.0
        %646 = vmatprep.subr.mxu0 0.0
        %647 = vmatpush1.msra.mxu0 0.0
        %648 = vmatprep.subr.mxu0 0.0
        %649 = vmatpush1.msra.mxu0 0.0
        %650 = vmatprep.subr.mxu0 0.0
        %651 = vmatpush1.msra.mxu0 0.0
        %652 = vmatprep.subr.mxu0 0.0
        %653 = vmatpush1.msra.mxu0 0.0
        %654 = vmatprep.subr.mxu0 0.0
        %655 = vmatpush1.msra.mxu0 0.0
        %656 = vmatprep.subr.mxu0 0.0
        %657 = vmatpush1.msra.mxu0 0.0
        %658 = vmatprep.subr.mxu0 0.0
        %659 = vmatpush1.msra.mxu0 0.0
        %660 = vmatprep.subr.mxu0 0.0
        %661 = vmatpush1.msra.mxu0 0.0
        %662 = vmatprep.subr.mxu0 0.0
        %663 = vmatpush1.msra.mxu0 0.0
        %664 = vmatprep.subr.mxu0 0.0
        %665 = vmatpush1.msra.mxu0 0.0
        %666 = vmatprep.subr.mxu0 0.0
        %667 = vmatpush1.msra.mxu0 0.0
        %668 = vmatprep.subr.mxu0 0.0
        %669 = vmatpush1.msra.mxu0 0.0
        %670 = vmatprep.subr.mxu0 0.0
        %671 = vmatpush1.msra.mxu0 0.0
        %672 = vmatprep.subr.mxu0 0.0
        %673 = vmatpush1.msra.mxu0 0.0
        %674 = vmatprep.subr.mxu0 %v642
        %675 = vmatpush1.msra.mxu0 %v640
        %676 = vmatprep.subr.mxu0 0.0
        %677 = vmatpush2.msra.mxu0 0.0
        %678 = vmatprep.subr.mxu0 0.0
        %679 = vmatpush2.msra.mxu0 0.0
        %680 = vmatprep.subr.mxu0 0.0
        %681 = vmatpush2.msra.mxu0 0.0
        %682 = vmatprep.subr.mxu0 0.0
        %683 = vmatpush2.msra.mxu0 0.0
        %684 = vmatprep.subr.mxu0 0.0
        %685 = vmatpush2.msra.mxu0 0.0
        %686 = vmatprep.subr.mxu0 0.0
        %687 = vmatpush2.msra.mxu0 0.0
        %688 = vmatprep.subr.mxu0 0.0
        %689 = vmatpush2.msra.mxu0 0.0
        %690 = vmatprep.subr.mxu0 0.0
        %691 = vmatpush2.msra.mxu0 0.0
        %692 = vmatprep.subr.mxu0 0.0
        %693 = vmatpush2.msra.mxu0 0.0
        %694 = vmatprep.subr.mxu0 0.0
        %695 = vmatpush2.msra.mxu0 0.0
        %696 = vmatprep.subr.mxu0 0.0
        %697 = vmatpush2.msra.mxu0 0.0
        %698 = vmatprep.subr.mxu0 0.0
        %699 = vmatpush2.msra.mxu0 0.0
        %700 = vmatprep.subr.mxu0 0.0
        %701 = vmatpush2.msra.mxu0 0.0
        %702 = vmatprep.subr.mxu0 0.0
        %703 = vmatpush2.msra.mxu0 0.0
        %704 = vmatprep.subr.mxu0 0.0
        %705 = vmatpush2.msra.mxu0 0.0
        %706 = vmatprep.subr.mxu0 0.0
        %707 = vmatpush2.msra.mxu0 0.0
        %708 = vmatprep.mubr.f32.mxu0 0.0
        %709 = vmatmul.mubr.f32.gmra.mxu0 %v638
        %v710 = vpop.f32.mrf.mxu0
        %v711 = vadd.f32 %v633, %v710
        %v712 = vpop.f32.mrf.mxu0
        %v713 = vadd.f32 %v635, %v712
        %714 = vdwg.mxu0
        %v715 = vcombine.low %v551, %v552
        %v717 = vunpack.c.l.s4 1983009808
        %v718 = vunpack.c.0.s8 %v717
        %v719 = vlaneseq
        %v720 = vshrl.u32 %v719, 7
        %v721 = vsub.s32 %v718, %v720
        %v722 = vrot.slane %v715, %v721
        %724 = vst [vmem:[#allocation2 + $0x2] sm:$0xf] %v722
        %v725 = vld [vmem:[#allocation2] sm:$0x3f]
        %v727 = vcombine.high %v725, %v725
        %v729 = vunpack.c.l.s4 1983009808
        %v730 = vunpack.c.0.s8 %v729
        %v731 = vlaneseq
        %v732 = vshrl.u32 %v731, 7
        %v733 = vsub.s32 %v730, %v732
        %v734 = vrot.slane %v725, %v733
        %v736 = vunpack.c.l.s4 1983009808
        %v737 = vunpack.c.0.s8 %v736
        %v738 = vlaneseq
        %v739 = vshrl.u32 %v738, 7
        %v740 = vsub.s32 %v737, %v739
        %v741 = vrot.slane %v727, %v740
        %v742 = vcombine.high %v734, %v734
        %743 = vrot.lane.b32.xlu0 %v734, 32
        %v744 = vpop.permute.xlu0 %743
        %745 = vrot.lane.b32.xlu0 %v742, 32
        %v746 = vpop.permute.xlu0 %745
        %747 = vrot.lane.b32.xlu0 %v741, 32
        %v748 = vpop.permute.xlu0 %747
        %v749 = vsel %vm399, %v744, %v746
        %v750 = vsel %vm399, %v746, %v748
        %v753 = vmax.f32 %v551, %v749
        %v754 = vmax.f32 %v552, %v750
        %755 = vrot.lane.b32.xlu0 %v734, 16
        %v756 = vpop.permute.xlu0 %755
        %757 = vrot.lane.b32.xlu0 %v742, 16
        %v758 = vpop.permute.xlu0 %757
        %759 = vrot.lane.b32.xlu0 %v741, 16
        %v760 = vpop.permute.xlu0 %759
        %v761 = vsel %vm412, %v756, %v758
        %v762 = vsel %vm412, %v758, %v760
        %v765 = vmax.f32 %v753, %v761
        %v766 = vmax.f32 %v754, %v762
        %v767 = vld [vmem:[#allocation2 + $0x2] sm:$0x3f]
        %v769 = vcombine.high %v767, %v767
        %v771 = vunpack.c.l.s4 1983009808
        %v772 = vunpack.c.0.s8 %v771
        %v773 = vlaneseq
        %v774 = vshrl.u32 %v773, 7
        %v775 = vsub.s32 %v772, %v774
        %v776 = vrot.slane %v767, %v775
        %v778 = vunpack.c.l.s4 1983009808
        %v779 = vunpack.c.0.s8 %v778
        %v780 = vlaneseq
        %v781 = vshrl.u32 %v780, 7
        %v782 = vsub.s32 %v779, %v781
        %v783 = vrot.slane %v769, %v782
        %v784 = vcombine.high %v776, %v776
        %785 = vrot.lane.b32.xlu0 %v776, 112
        %v786 = vpop.permute.xlu0 %785
        %787 = vrot.lane.b32.xlu0 %v784, 112
        %v788 = vpop.permute.xlu0 %787
        %789 = vrot.lane.b32.xlu0 %v783, 112
        %v790 = vpop.permute.xlu0 %789
        %v791 = vsel %vm443, %v786, %v788
        %v792 = vsel %vm443, %v788, %v790
        %v795 = vmax.f32 %v765, %v791
        %v796 = vmax.f32 %v766, %v792
        %797 = vrot.lane.b32.xlu0 %v776, 96
        %v798 = vpop.permute.xlu0 %797
        %799 = vrot.lane.b32.xlu0 %v784, 96
        %v800 = vpop.permute.xlu0 %799
        %801 = vrot.lane.b32.xlu0 %v783, 96
        %v802 = vpop.permute.xlu0 %801
        %v803 = vsel %vm456, %v798, %v800
        %v804 = vsel %vm456, %v800, %v802
        %v807 = vmax.f32 %v795, %v803
        %v808 = vmax.f32 %v796, %v804
        %809 = vrot.lane.b32.xlu0 %v807, 2
        %v810 = vpop.permute.xlu0 %809
        %811 = vrot.lane.b32.xlu0 %v808, 2
        %v812 = vpop.permute.xlu0 %811
        %v813 = vsel %vm469, %v810, %v812
        %v814 = vsel %vm469, %v812, %v810
        %v815 = vsel %vm481, %v814, -inf
        %v816 = vsel %vm482, %v813, -inf
        %v817 = vmax.f32 %v807, %v815
        %v818 = vmax.f32 %v808, %v816
        %819 = vrot.lane.b32.xlu0 %v807, 1
        %v820 = vpop.permute.xlu0 %819
        %821 = vrot.lane.b32.xlu0 %v808, 1
        %v822 = vpop.permute.xlu0 %821
        %v823 = vsel %vm491, %v820, %v822
        %v824 = vsel %vm491, %v822, %v820
        %v825 = vsel %vm503, %v824, -inf
        %v826 = vsel %vm504, %v823, -inf
        %v827 = vmax.f32 %v817, %v825
        %v828 = vmax.f32 %v818, %v826
        %829 = vrot.lane.b32.xlu0 %v807, 127
        %v830 = vpop.permute.xlu0 %829
        %831 = vrot.lane.b32.xlu0 %v808, 127
        %v832 = vpop.permute.xlu0 %831
        %v833 = vsel %vm513, %v830, %v832
        %v834 = vsel %vm513, %v832, %v830
        %v835 = vsel %vm525, %v833, -inf
        %v836 = vsel %vm526, %v834, -inf
        %v837 = vmax.f32 %v827, %v835
        %v838 = vmax.f32 %v828, %v836
        %839 = vrot.lane.b32.xlu0 %v807, 126
        %v840 = vpop.permute.xlu0 %839
        %841 = vrot.lane.b32.xlu0 %v808, 126
        %v842 = vpop.permute.xlu0 %841
        %v843 = vsel %vm535, %v840, %v842
        %v844 = vsel %vm535, %v842, %v840
        %v845 = vsel %vm547, %v843, -inf
        %v846 = vsel %vm548, %v844, -inf
        %v847 = vmax.f32 %v837, %v845
        %v848 = vmax.f32 %v838, %v846
        %s849 = scalar_lea.vmem %s3, 16
        %v850 = vld [vmem:[%s849] sm:$0xff]
        %v852 = vsel %vm555, %v850, 0
        %v855 = vsel %vm559, %v847, 0
        %v858 = vsel %vm559, %v848, 0
        %860 = vmatprep.subr.mxu0 0.0
        %861 = vmatpush1.msra.mxu0 0.0
        %862 = vmatprep.subr.mxu0 0.0
        %863 = vmatpush1.msra.mxu0 0.0
        %864 = vmatprep.subr.mxu0 0.0
        %865 = vmatpush1.msra.mxu0 0.0
        %866 = vmatprep.subr.mxu0 0.0
        %867 = vmatpush1.msra.mxu0 0.0
        %868 = vmatprep.subr.mxu0 0.0
        %869 = vmatpush1.msra.mxu0 0.0
        %870 = vmatprep.subr.mxu0 0.0
        %871 = vmatpush1.msra.mxu0 0.0
        %872 = vmatprep.subr.mxu0 0.0
        %873 = vmatpush1.msra.mxu0 0.0
        %874 = vmatprep.subr.mxu0 0.0
        %875 = vmatpush1.msra.mxu0 0.0
        %876 = vmatprep.subr.mxu0 0.0
        %877 = vmatpush1.msra.mxu0 0.0
        %878 = vmatprep.subr.mxu0 0.0
        %879 = vmatpush1.msra.mxu0 0.0
        %880 = vmatprep.subr.mxu0 0.0
        %881 = vmatpush1.msra.mxu0 0.0
        %882 = vmatprep.subr.mxu0 0.0
        %883 = vmatpush1.msra.mxu0 0.0
        %884 = vmatprep.subr.mxu0 0.0
        %885 = vmatpush1.msra.mxu0 0.0
        %886 = vmatprep.subr.mxu0 0.0
        %887 = vmatpush1.msra.mxu0 0.0
        %888 = vmatprep.subr.mxu0 0.0
        %889 = vmatpush1.msra.mxu0 0.0
        %890 = vmatprep.subr.mxu0 %v858
        %891 = vmatpush1.msra.mxu0 %v855
        %892 = vmatprep.subr.mxu0 0.0
        %893 = vmatpush2.msra.mxu0 0.0
        %894 = vmatprep.subr.mxu0 0.0
        %895 = vmatpush2.msra.mxu0 0.0
        %896 = vmatprep.subr.mxu0 0.0
        %897 = vmatpush2.msra.mxu0 0.0
        %898 = vmatprep.subr.mxu0 0.0
        %899 = vmatpush2.msra.mxu0 0.0
        %900 = vmatprep.subr.mxu0 0.0
        %901 = vmatpush2.msra.mxu0 0.0
        %902 = vmatprep.subr.mxu0 0.0
        %903 = vmatpush2.msra.mxu0 0.0
        %904 = vmatprep.subr.mxu0 0.0
        %905 = vmatpush2.msra.mxu0 0.0
        %906 = vmatprep.subr.mxu0 0.0
        %907 = vmatpush2.msra.mxu0 0.0
        %908 = vmatprep.subr.mxu0 0.0
        %909 = vmatpush2.msra.mxu0 0.0
        %910 = vmatprep.subr.mxu0 0.0
        %911 = vmatpush2.msra.mxu0 0.0
        %912 = vmatprep.subr.mxu0 0.0
        %913 = vmatpush2.msra.mxu0 0.0
        %914 = vmatprep.subr.mxu0 0.0
        %915 = vmatpush2.msra.mxu0 0.0
        %916 = vmatprep.subr.mxu0 0.0
        %917 = vmatpush2.msra.mxu0 0.0
        %918 = vmatprep.subr.mxu0 0.0
        %919 = vmatpush2.msra.mxu0 0.0
        %920 = vmatprep.subr.mxu0 0.0
        %921 = vmatpush2.msra.mxu0 0.0
        %922 = vmatprep.subr.mxu0 0.0
        %923 = vmatpush2.msra.mxu0 0.0
        %924 = vmatprep.mubr.f32.mxu0 0.0
        %925 = vmatmul.mubr.f32.gmra.mxu0 %v852
        %v926 = vpop.f32.mrf.mxu0
        %v927 = vadd.f32 0.0, %v926
        %v928 = vpop.f32.mrf.mxu0
        %v929 = vadd.f32 0.0, %v928
        %930 = vdwg.mxu0
        %v931 = vadd.f32 %v711, %v927
        %v932 = vadd.f32 %v713, %v929
        %v933 = vcombine.low %v847, %v848
        %v935 = vunpack.c.l.s4 1983009808
        %v936 = vunpack.c.0.s8 %v935
        %v937 = vlaneseq
        %v938 = vshrl.u32 %v937, 7
        %v939 = vsub.s32 %v936, %v938
        %v940 = vrot.slane %v933, %v939
        %942 = vst [vmem:[#allocation2 + $0x2] sm:$0xf] %v940
        %v943 = vld [vmem:[#allocation2] sm:$0x3f]
        %v945 = vcombine.high %v943, %v943
        %v947 = vunpack.c.l.s4 1983009808
        %v948 = vunpack.c.0.s8 %v947
        %v949 = vlaneseq
        %v950 = vshrl.u32 %v949, 7
        %v951 = vsub.s32 %v948, %v950
        %v952 = vrot.slane %v943, %v951
        %v954 = vunpack.c.l.s4 1983009808
        %v955 = vunpack.c.0.s8 %v954
        %v956 = vlaneseq
        %v957 = vshrl.u32 %v956, 7
        %v958 = vsub.s32 %v955, %v957
        %v959 = vrot.slane %v945, %v958
        %v960 = vcombine.high %v952, %v952
        %961 = vrot.lane.b32.xlu0 %v952, 32
        %v962 = vpop.permute.xlu0 %961
        %963 = vrot.lane.b32.xlu0 %v960, 32
        %v964 = vpop.permute.xlu0 %963
        %965 = vrot.lane.b32.xlu0 %v959, 32
        %v966 = vpop.permute.xlu0 %965
        %v967 = vsel %vm399, %v962, %v964
        %v968 = vsel %vm399, %v964, %v966
        %v971 = vmax.f32 %v847, %v967
        %v972 = vmax.f32 %v848, %v968
        %973 = vrot.lane.b32.xlu0 %v952, 16
        %v974 = vpop.permute.xlu0 %973
        %975 = vrot.lane.b32.xlu0 %v960, 16
        %v976 = vpop.permute.xlu0 %975
        %977 = vrot.lane.b32.xlu0 %v959, 16
        %v978 = vpop.permute.xlu0 %977
        %v979 = vsel %vm412, %v974, %v976
        %v980 = vsel %vm412, %v976, %v978
        %v983 = vmax.f32 %v971, %v979
        %v984 = vmax.f32 %v972, %v980
        %v985 = vld [vmem:[#allocation2 + $0x2] sm:$0x3f]
        %v987 = vcombine.high %v985, %v985
        %v989 = vunpack.c.l.s4 1983009808
        %v990 = vunpack.c.0.s8 %v989
        %v991 = vlaneseq
        %v992 = vshrl.u32 %v991, 7
        %v993 = vsub.s32 %v990, %v992
        %v994 = vrot.slane %v985, %v993
        %v996 = vunpack.c.l.s4 1983009808
        %v997 = vunpack.c.0.s8 %v996
        %v998 = vlaneseq
        %v999 = vshrl.u32 %v998, 7
        %v1000 = vsub.s32 %v997, %v999
        %v1001 = vrot.slane %v987, %v1000
        %v1002 = vcombine.high %v994, %v994
        %1003 = vrot.lane.b32.xlu0 %v994, 112
        %v1004 = vpop.permute.xlu0 %1003
        %1005 = vrot.lane.b32.xlu0 %v1002, 112
        %v1006 = vpop.permute.xlu0 %1005
        %1007 = vrot.lane.b32.xlu0 %v1001, 112
        %v1008 = vpop.permute.xlu0 %1007
        %v1009 = vsel %vm443, %v1004, %v1006
        %v1010 = vsel %vm443, %v1006, %v1008
        %v1013 = vmax.f32 %v983, %v1009
        %v1014 = vmax.f32 %v984, %v1010
        %1015 = vrot.lane.b32.xlu0 %v994, 96
        %v1016 = vpop.permute.xlu0 %1015
        %1017 = vrot.lane.b32.xlu0 %v1002, 96
        %v1018 = vpop.permute.xlu0 %1017
        %1019 = vrot.lane.b32.xlu0 %v1001, 96
        %v1020 = vpop.permute.xlu0 %1019
        %v1021 = vsel %vm456, %v1016, %v1018
        %v1022 = vsel %vm456, %v1018, %v1020
        %v1025 = vmax.f32 %v1013, %v1021
        %v1026 = vmax.f32 %v1014, %v1022
        %1027 = vrot.lane.b32.xlu0 %v1025, 2
        %v1028 = vpop.permute.xlu0 %1027
        %1029 = vrot.lane.b32.xlu0 %v1026, 2
        %v1030 = vpop.permute.xlu0 %1029
        %v1031 = vsel %vm469, %v1028, %v1030
        %v1032 = vsel %vm469, %v1030, %v1028
        %v1033 = vsel %vm481, %v1032, -inf
        %v1034 = vsel %vm482, %v1031, -inf
        %v1035 = vmax.f32 %v1025, %v1033
        %v1036 = vmax.f32 %v1026, %v1034
        %1037 = vrot.lane.b32.xlu0 %v1025, 1
        %v1038 = vpop.permute.xlu0 %1037
        %1039 = vrot.lane.b32.xlu0 %v1026, 1
        %v1040 = vpop.permute.xlu0 %1039
        %v1041 = vsel %vm491, %v1038, %v1040
        %v1042 = vsel %vm491, %v1040, %v1038
        %v1043 = vsel %vm503, %v1042, -inf
        %v1044 = vsel %vm504, %v1041, -inf
        %v1045 = vmax.f32 %v1035, %v1043
        %v1046 = vmax.f32 %v1036, %v1044
        %1047 = vrot.lane.b32.xlu0 %v1025, 127
        %v1048 = vpop.permute.xlu0 %1047
        %1049 = vrot.lane.b32.xlu0 %v1026, 127
        %v1050 = vpop.permute.xlu0 %1049
        %v1051 = vsel %vm513, %v1048, %v1050
        %v1052 = vsel %vm513, %v1050, %v1048
        %v1053 = vsel %vm525, %v1051, -inf
        %v1054 = vsel %vm526, %v1052, -inf
        %v1055 = vmax.f32 %v1045, %v1053
        %v1056 = vmax.f32 %v1046, %v1054
        %1057 = vrot.lane.b32.xlu0 %v1025, 126
        %v1058 = vpop.permute.xlu0 %1057
        %1059 = vrot.lane.b32.xlu0 %v1026, 126
        %v1060 = vpop.permute.xlu0 %1059
        %v1061 = vsel %vm535, %v1058, %v1060
        %v1062 = vsel %vm535, %v1060, %v1058
        %v1063 = vsel %vm547, %v1061, -inf
        %v1064 = vsel %vm548, %v1062, -inf
        %v1065 = vmax.f32 %v1055, %v1063
        %v1066 = vmax.f32 %v1056, %v1064
        %s1067 = scalar_lea.vmem %s3, 24
        %v1068 = vld [vmem:[%s1067] sm:$0xff]
        %v1070 = vsel %vm555, %v1068, 0
        %v1073 = vsel %vm559, %v1065, 0
        %v1076 = vsel %vm559, %v1066, 0
        %1078 = vmatprep.subr.mxu0 0.0
        %1079 = vmatpush1.msra.mxu0 0.0
        %1080 = vmatprep.subr.mxu0 0.0
        %1081 = vmatpush1.msra.mxu0 0.0
        %1082 = vmatprep.subr.mxu0 0.0
        %1083 = vmatpush1.msra.mxu0 0.0
        %1084 = vmatprep.subr.mxu0 0.0
        %1085 = vmatpush1.msra.mxu0 0.0
        %1086 = vmatprep.subr.mxu0 0.0
        %1087 = vmatpush1.msra.mxu0 0.0
        %1088 = vmatprep.subr.mxu0 0.0
        %1089 = vmatpush1.msra.mxu0 0.0
        %1090 = vmatprep.subr.mxu0 0.0
        %1091 = vmatpush1.msra.mxu0 0.0
        %1092 = vmatprep.subr.mxu0 0.0
        %1093 = vmatpush1.msra.mxu0 0.0
        %1094 = vmatprep.subr.mxu0 0.0
        %1095 = vmatpush1.msra.mxu0 0.0
        %1096 = vmatprep.subr.mxu0 0.0
        %1097 = vmatpush1.msra.mxu0 0.0
        %1098 = vmatprep.subr.mxu0 0.0
        %1099 = vmatpush1.msra.mxu0 0.0
        %1100 = vmatprep.subr.mxu0 0.0
        %1101 = vmatpush1.msra.mxu0 0.0
        %1102 = vmatprep.subr.mxu0 0.0
        %1103 = vmatpush1.msra.mxu0 0.0
        %1104 = vmatprep.subr.mxu0 0.0
        %1105 = vmatpush1.msra.mxu0 0.0
        %1106 = vmatprep.subr.mxu0 0.0
        %1107 = vmatpush1.msra.mxu0 0.0
        %1108 = vmatprep.subr.mxu0 %v1076
        %1109 = vmatpush1.msra.mxu0 %v1073
        %1110 = vmatprep.subr.mxu0 0.0
        %1111 = vmatpush2.msra.mxu0 0.0
        %1112 = vmatprep.subr.mxu0 0.0
        %1113 = vmatpush2.msra.mxu0 0.0
        %1114 = vmatprep.subr.mxu0 0.0
        %1115 = vmatpush2.msra.mxu0 0.0
        %1116 = vmatprep.subr.mxu0 0.0
        %1117 = vmatpush2.msra.mxu0 0.0
        %1118 = vmatprep.subr.mxu0 0.0
        %1119 = vmatpush2.msra.mxu0 0.0
        %1120 = vmatprep.subr.mxu0 0.0
        %1121 = vmatpush2.msra.mxu0 0.0
        %1122 = vmatprep.subr.mxu0 0.0
        %1123 = vmatpush2.msra.mxu0 0.0
        %1124 = vmatprep.subr.mxu0 0.0
        %1125 = vmatpush2.msra.mxu0 0.0
        %1126 = vmatprep.subr.mxu0 0.0
        %1127 = vmatpush2.msra.mxu0 0.0
        %1128 = vmatprep.subr.mxu0 0.0
        %1129 = vmatpush2.msra.mxu0 0.0
        %1130 = vmatprep.subr.mxu0 0.0
        %1131 = vmatpush2.msra.mxu0 0.0
        %1132 = vmatprep.subr.mxu0 0.0
        %1133 = vmatpush2.msra.mxu0 0.0
        %1134 = vmatprep.subr.mxu0 0.0
        %1135 = vmatpush2.msra.mxu0 0.0
        %1136 = vmatprep.subr.mxu0 0.0
        %1137 = vmatpush2.msra.mxu0 0.0
        %1138 = vmatprep.subr.mxu0 0.0
        %1139 = vmatpush2.msra.mxu0 0.0
        %1140 = vmatprep.subr.mxu0 0.0
        %1141 = vmatpush2.msra.mxu0 0.0
        %1142 = vmatprep.mubr.f32.mxu0 0.0
        %1143 = vmatmul.mubr.f32.gmra.mxu0 %v1070
        %v1144 = vpop.f32.mrf.mxu0
        %v1145 = vadd.f32 0.0, %v1144
        %v1146 = vpop.f32.mrf.mxu0
        %v1147 = vadd.f32 0.0, %v1146
        %1148 = vdwg.mxu0
        %v1149 = vadd.f32 %v931, %v1145
        %v1150 = vadd.f32 %v932, %v1147
        %v1151 = vld [vmem:[%s4] sm:$0xff]
        %1153 = vset.pattern.permute.xlu0 0
        %1154 = vperm.xlu0 %1153, %v1151
        %v1155 = vpop.permute.xlu0 %1154
        %v1157 = vadd.f32 %v1149, %v1155
        %v1158 = vadd.f32 %v1150, %v1155
        %v1159 = vxor.u32 %v1157, 2147483648
        %v1160 = vxor.u32 %v1158, 2147483648
        %v1161 = vmul.f32 %v1159, 1.442695
        %v1162 = vpow.pop %v1161
        %v1163 = vmul.f32 %v1160, 1.442695
        %v1164 = vpow.pop %v1163
        %v1165 = vadd.f32 %v1162, 1.0
        %v1166 = vadd.f32 %v1164, 1.0
        %v1167 = vrcp.pop %v1165
        %v1168 = vmul.f32 1.0, %v1167
        %v1169 = vrcp.pop %v1166
        %v1170 = vmul.f32 1.0, %v1169
        %v1171 = vmul.f32 %v1157, %v1168
        %v1172 = vmul.f32 %v1158, %v1170
        %1173 = vst [vmem:[%s244] sm:$0xff] %v1171
        %1174 = vst [vmem:[%s244 + $0x8] sm:$0xff] %v1172
        %s1175 = sand.u32 %s159, 1
        %s1176 = scalar_lea.sflag [#allocation4], %s1175
        %s1177 = sand.u32 %s159, 1
        %s1178 = smul.addr %s1177, 16
        %s1179 = scalar_lea.vmem [#allocation3], %s1178
        // Predicated region
        $region45: #{tpu_custom_call.1} parent=43 // pred_check
          %p1180 = pneg %p169
        $region46: #{tpu_custom_call.1} parent=43 // pred_check_branch
          %1182 = sbr.rel (%p1180) target = $region48
        $region47: #{tpu_custom_call.1} parent=43 // pred_region
          %s1184 = ssub.s32 256, 256
          %1185 = vsyncadd %s1176, %s1184
          %s1186 = smul.addr %s20, 2
          %s1187 = smul.addr %s1186, 128
          %s1188 = scalar_lea.hbm %s6, %s1187
          %s1190 = sshll.u32 %s1179, 4
          %s1191 = int_to_ptr.vmem [resolvable:$true] %s1190
          %1193 = dma.vmem_to_hbm [thread:$0]  %s1191, 256, %s1188, %s1176
        $region48: #{tpu_custom_call.1} parent=43 // pred_fallthru
          _
      $region44: #{tpu_custom_call.1} parent=5 // pred_fallthru
        _
      %p1194 = scmp.le.s32.totalorder 2, %s15
      // Predicated region
      $region49: #{tpu_custom_call.1} parent=5 // pred_check
        %p1195 = pneg %p1194
      $region50: #{tpu_custom_call.1} parent=5 // pred_check_branch
        %1197 = sbr.rel (%p1195) target = $region52
      $region51: #{tpu_custom_call.1} parent=5 // pred_region
        %s1198 = ssub.s32 %s15, 2
        // Predicated region
        $region53: #{tpu_custom_call.1} parent=51 // pred_check
          %p1199 = pneg %p175
        $region54: #{tpu_custom_call.1} parent=51 // pred_check_branch
          %1201 = sbr.rel (%p1199) target = $region56
        $region55: #{tpu_custom_call.1} parent=51 // pred_region
          %s1202 = sand.u32 %s160, 1
          %s1203 = scalar_lea.sflag [#allocation4], %s1202
          %s1204 = sand.u32 %s160, 1
          %s1205 = smul.addr %s1204, 16
          %s1206 = scalar_lea.vmem [#allocation3], %s1205
          %1207 = dma.done %s1203, 256
        $region56: #{tpu_custom_call.1} parent=51 // pred_fallthru
          _
      $region52: #{tpu_custom_call.1} parent=5 // pred_fallthru
        _
    $region6: #{tpu_custom_call.1} parent=1 // loop_footer
      %s19 = sadd.s32 1, %s15
    $region7: #{tpu_custom_call.1} parent=1 // loop_footer_branch
      %14 = sbr.rel target = $region3
    $region8: #{tpu_custom_call.1} parent=1 // loop_exit
      _
    %1208 = vsyncpa [#allocation4], 1
    %s1209 = scalar_lea.sflag [#allocation4], 1
    %1210 = vsyncpa %s1209, 1

</llo_original>
